<compile_context>
chip_gen: v7x
topology: tpu7x:2x2x1
jax: 0.10.0
libtpu: 0.0.40
codegen_flags: <defaults>
</compile_context>

<pallas_src>
import jax
import jax.numpy as jnp
from jax.experimental import pallas as pl
from jax.experimental.pallas import tpu as pltpu


def mlp_kernel(x_ref, w1_ref, b1_ref, w2_ref, b2_ref, w3_ref, b3_ref, o_ref):
    # x tile arrives f32; cast to bf16 on-chip (hidden under the DMA).
    x = x_ref[...].astype(jnp.bfloat16)                                # (TM, 784)
    h1 = jnp.dot(x, w1_ref[...], preferred_element_type=jnp.float32) + b1_ref[...]
    h1 = jnp.maximum(h1, 0.0).astype(jnp.bfloat16)                     # (TM, 256)
    h2 = jnp.dot(h1, w2_ref[...], preferred_element_type=jnp.float32) + b2_ref[...]
    h2 = jnp.maximum(h2, 0.0).astype(jnp.bfloat16)                     # (TM, 128)
    y = jnp.dot(h2, w3_ref[...], preferred_element_type=jnp.float32) + b3_ref[...]
    # Lane-dense (TM, 128) bf16 store; columns 10..127 come from zero-padded w3/b3.
    o_ref[...] = y.astype(jnp.bfloat16)


def _pick_tm(batch, tm):
    """TM: multiple of 128, no bigger than needed, >=2 grid steps when possible."""
    tm = max(128, (tm // 128) * 128)
    tm = min(tm, pl.cdiv(batch, 128) * 128)          # don't exceed (rounded) batch
    if batch > 2 * 128:
        half = pl.cdiv(pl.cdiv(batch, 2), 128) * 128
        tm = min(tm, half)                           # >=2 steps -> v7x uses both TCs
    return tm


def mnist_net_forward(x_nchw, params, *, tm=512):
    """Forward pass matching MNISTNet.forward. x_nchw: (B, 1, 28, 28) f32.

    Returns bf16 logits of shape (B, 10).
    """
    w1, b1, w2, b2, w3p, b3p = params  # w* bf16 (in, out); b* f32; layer-3 padded to 128 cols
    x = x_nchw.reshape(-1, 784)        # == x.view(-1, 784); reshape is free, dtype stays f32
    batch = x.shape[0]

    tm = _pick_tm(batch, tm)
    n_tiles = pl.cdiv(batch, tm)       # ragged last tile handled by Pallas masking
    n_out = w3p.shape[1]               # 128 (padded)

    cost = pl.CostEstimate(
        flops=2 * batch * (784 * 256 + 256 * 128 + 128 * n_out),
        transcendentals=0,
        bytes_accessed=(
            x.size * 4                                     # f32 input stream
            + (w1.size + w2.size + w3p.size) * 2           # bf16 resident weights
            + (b1.size + b2.size + b3p.size) * 4           # f32 biases
            + batch * n_out * 2                            # bf16 output
        ),
    )

    resident = lambda shape: pl.BlockSpec(shape, lambda i: (0, 0))

    out = pl.pallas_call(
        mlp_kernel,
        out_shape=jax.ShapeDtypeStruct((batch, n_out), jnp.bfloat16),
        grid=(n_tiles,),
        in_specs=[
            pl.BlockSpec((tm, 784), lambda i: (i, 0)),   # x tile streams per step (f32)
            resident((784, 256)),                        # w1 (resident, bf16)
            resident((1, 256)),                          # b1 (f32)
            resident((256, 128)),                        # w2
            resident((1, 128)),                          # b2
            resident((128, n_out)),                      # w3 (padded to 128 cols)
            resident((1, n_out)),                        # b3 (padded)
        ],
        out_specs=pl.BlockSpec((tm, n_out), lambda i: (i, 0)),
        compiler_params=pltpu.CompilerParams(
            dimension_semantics=("parallel",),           # batch axis: shard over TCs on v7x
        ),
        cost_estimate=cost,
    )(x, w1, b1, w2, b2, w3p, b3p)

    # Drop the zero-padded output columns (padded/garbage batch rows never exist:
    # the output array is exactly (batch, n_out) and OOB block rows are masked).
    return out[:, :10]


def init_params(key):
    """Deterministic init (Kaiming-uniform-ish, like nn.Linear defaults)."""
    def linear(key, fan_in, fan_out):
        kw, kb = jax.random.split(key)
        bound = 1.0 / jnp.sqrt(jnp.float32(fan_in))
        # Stored as (in, out) so the kernel does x @ W with no transpose.
        w = jax.random.uniform(kw, (fan_in, fan_out), jnp.float32, -bound, bound)
        b = jax.random.uniform(kb, (1, fan_out), jnp.float32, -bound, bound)
        return w, b

    k1, k2, k3 = jax.random.split(key, 3)
    w1, b1 = linear(k1, 784, 256)
    w2, b2 = linear(k2, 256, 128)
    w3, b3 = linear(k3, 128, 10)

    # Zero-pad the classifier to a lane-dense 128-wide output.
    w3p = jnp.zeros((128, 128), jnp.float32).at[:, :10].set(w3)
    b3p = jnp.zeros((1, 128), jnp.float32).at[:, :10].set(b3)

    # Weights in bf16 (halves weight HBM traffic; bf16-native MXU); biases f32.
    return (
        w1.astype(jnp.bfloat16), b1,
        w2.astype(jnp.bfloat16), b2,
        w3p.astype(jnp.bfloat16), b3p,
    )


def reference_forward(x_nchw, params):
    """Pure-JAX reference with identical bf16/f32 numerics."""
    w1, b1, w2, b2, w3p, b3p = params
    x = x_nchw.reshape(-1, 784).astype(jnp.bfloat16)
    h1 = jnp.maximum(jnp.dot(x, w1, preferred_element_type=jnp.float32) + b1, 0.0)
    h1 = h1.astype(jnp.bfloat16)
    h2 = jnp.maximum(jnp.dot(h1, w2, preferred_element_type=jnp.float32) + b2, 0.0)
    h2 = h2.astype(jnp.bfloat16)
    out = jnp.dot(h2, w3p, preferred_element_type=jnp.float32) + b3p
    return out.astype(jnp.bfloat16)[:, :10]


if __name__ == "__main__":
    key = jax.random.PRNGKey(0)
    k_params, k_x = jax.random.split(key)

    params = init_params(k_params)
    # Small MNIST-shaped batch: (B=2, C=1, H=28, W=28) NCHW, like the torch module.
    x = jax.random.normal(k_x, (2, 1, 28, 28), jnp.float32)

    out = mnist_net_forward(x, params)
    out = jax.block_until_ready(out)

    ref = reference_forward(x, params)
    assert out.shape == (2, 10), out.shape
    assert jnp.allclose(
        out.astype(jnp.float32), ref.astype(jnp.float32), atol=2e-2, rtol=2e-2
    ), "mismatch vs JAX reference"

    print("KERNEL_OK")
</pallas_src>

<mosaic_0001>
module attributes {stable_mosaic.version = 11 : i64} {
  func.func @mlp_kernel(%arg0: i32, %arg1: memref<128x784xf32, #tpu.memory_space<vmem>>, %arg2: memref<784x256xbf16, #tpu.memory_space<vmem>>, %arg3: memref<1x256xf32, #tpu.memory_space<vmem>>, %arg4: memref<256x128xbf16, #tpu.memory_space<vmem>>, %arg5: memref<1x128xf32, #tpu.memory_space<vmem>>, %arg6: memref<128x128xbf16, #tpu.memory_space<vmem>>, %arg7: memref<1x128xf32, #tpu.memory_space<vmem>>, %arg8: memref<128x128xbf16, #tpu.memory_space<vmem>>) attributes {dimension_semantics = [#tpu.dimension_semantics<parallel>], iteration_bounds = array<i64: 1>, scalar_prefetch = 0 : i64, scratch_operands = 0 : i64, tpu.core_type = #tpu.core_type<tc>, window_params = [{transform_indices = @transform_0, window_bounds = array<i64: 128, 784>}, {pipeline_mode = #tpu.pipeline_mode<synchronous>, transform_indices = @transform_1, window_bounds = array<i64: 784, 256>}, {pipeline_mode = #tpu.pipeline_mode<synchronous>, transform_indices = @transform_2, window_bounds = array<i64: 1, 256>}, {pipeline_mode = #tpu.pipeline_mode<synchronous>, transform_indices = @transform_3, window_bounds = array<i64: 256, 128>}, {pipeline_mode = #tpu.pipeline_mode<synchronous>, transform_indices = @transform_4, window_bounds = array<i64: 1, 128>}, {pipeline_mode = #tpu.pipeline_mode<synchronous>, transform_indices = @transform_5, window_bounds = array<i64: 128, 128>}, {pipeline_mode = #tpu.pipeline_mode<synchronous>, transform_indices = @transform_6, window_bounds = array<i64: 1, 128>}, {transform_indices = @transform_7, window_bounds = array<i64: 128, 128>}]} {
    %c0 = arith.constant 0 : index
    %c0_0 = arith.constant 0 : index
    %0 = vector.load %arg1[%c0, %c0_0] : memref<128x784xf32, #tpu.memory_space<vmem>>, vector<128x784xf32>
    %1 = arith.truncf %0 : vector<128x784xf32> to vector<128x784xbf16>
    %c0_1 = arith.constant 0 : index
    %c0_2 = arith.constant 0 : index
    %2 = vector.load %arg2[%c0_1, %c0_2] : memref<784x256xbf16, #tpu.memory_space<vmem>>, vector<784x256xbf16>
    %cst = arith.constant dense<0.000000e+00> : vector<128x256xf32>
    %3 = tpu.matmul %1, %2, %cst {dimension_numbers = #tpu.dot_dimension_numbers<[1], [0], [0], [1], [0, 0, 1, 1], [], []>} : vector<128x784xbf16>, vector<784x256xbf16>, vector<128x256xf32> -> vector<128x256xf32>
    %c0_3 = arith.constant 0 : index
    %c0_4 = arith.constant 0 : index
    %4 = vector.load %arg3[%c0_3, %c0_4] : memref<1x256xf32, #tpu.memory_space<vmem>>, vector<1x256xf32>
    %5 = vector.broadcast %4 : vector<1x256xf32> to vector<128x256xf32>
    %6 = arith.addf %3, %5 : vector<128x256xf32>
    %cst_5 = arith.constant 0.000000e+00 : f32
    %7 = vector.broadcast %cst_5 : f32 to vector<128x256xf32>
    %8 = arith.maximumf %6, %7 : vector<128x256xf32>
    %9 = arith.truncf %8 : vector<128x256xf32> to vector<128x256xbf16>
    %c0_6 = arith.constant 0 : index
    %c0_7 = arith.constant 0 : index
    %10 = vector.load %arg4[%c0_6, %c0_7] : memref<256x128xbf16, #tpu.memory_space<vmem>>, vector<256x128xbf16>
    %cst_8 = arith.constant dense<0.000000e+00> : vector<128x128xf32>
    %11 = tpu.matmul %9, %10, %cst_8 {dimension_numbers = #tpu.dot_dimension_numbers<[1], [0], [0], [1], [0, 0, 1, 1], [], []>} : vector<128x256xbf16>, vector<256x128xbf16>, vector<128x128xf32> -> vector<128x128xf32>
    %c0_9 = arith.constant 0 : index
    %c0_10 = arith.constant 0 : index
    %12 = vector.load %arg5[%c0_9, %c0_10] : memref<1x128xf32, #tpu.memory_space<vmem>>, vector<1x128xf32>
    %13 = vector.broadcast %12 : vector<1x128xf32> to vector<128x128xf32>
    %14 = arith.addf %11, %13 : vector<128x128xf32>
    %cst_11 = arith.constant 0.000000e+00 : f32
    %15 = vector.broadcast %cst_11 : f32 to vector<128x128xf32>
    %16 = arith.maximumf %14, %15 : vector<128x128xf32>
    %17 = arith.truncf %16 : vector<128x128xf32> to vector<128x128xbf16>
    %c0_12 = arith.constant 0 : index
    %c0_13 = arith.constant 0 : index
    %18 = vector.load %arg6[%c0_12, %c0_13] : memref<128x128xbf16, #tpu.memory_space<vmem>>, vector<128x128xbf16>
    %cst_14 = arith.constant dense<0.000000e+00> : vector<128x128xf32>
    %19 = tpu.matmul %17, %18, %cst_14 {dimension_numbers = #tpu.dot_dimension_numbers<[1], [0], [0], [1], [0, 0, 1, 1], [], []>} : vector<128x128xbf16>, vector<128x128xbf16>, vector<128x128xf32> -> vector<128x128xf32>
    %c0_15 = arith.constant 0 : index
    %c0_16 = arith.constant 0 : index
    %20 = vector.load %arg7[%c0_15, %c0_16] : memref<1x128xf32, #tpu.memory_space<vmem>>, vector<1x128xf32>
    %21 = vector.broadcast %20 : vector<1x128xf32> to vector<128x128xf32>
    %22 = arith.addf %19, %21 : vector<128x128xf32>
    %23 = arith.truncf %22 : vector<128x128xf32> to vector<128x128xbf16>
    %c0_17 = arith.constant 0 : index
    %c0_18 = arith.constant 0 : index
    %24 = vector.load %arg8[%c0_17, %c0_18] : memref<128x128xbf16, #tpu.memory_space<vmem>>, vector<128x128xbf16>
    tpu.vector_store %arg8[%c0_17, %c0_18], %23 {strides = array<i32>} : memref<128x128xbf16, #tpu.memory_space<vmem>>, vector<128x128xbf16>,
    return
  }
  func.func @transform_0(%arg0: i32) -> (i32, i32) {
    %c0_i32 = arith.constant 0 : i32
    %c0_i32_0 = arith.constant 0 : i32
    return %arg0, %c0_i32 : i32, i32
  }
  func.func @transform_1(%arg0: i32) -> (i32, i32) {
    %c0_i32 = arith.constant 0 : i32
    %c0_i32_0 = arith.constant 0 : i32
    %c0_i32_1 = arith.constant 0 : i32
    return %c0_i32, %c0_i32_0 : i32, i32
  }
  func.func @transform_2(%arg0: i32) -> (i32, i32) {
    %c0_i32 = arith.constant 0 : i32
    %c0_i32_0 = arith.constant 0 : i32
    %c0_i32_1 = arith.constant 0 : i32
    return %c0_i32, %c0_i32_0 : i32, i32
  }
  func.func @transform_3(%arg0: i32) -> (i32, i32) {
    %c0_i32 = arith.constant 0 : i32
    %c0_i32_0 = arith.constant 0 : i32
    %c0_i32_1 = arith.constant 0 : i32
    return %c0_i32, %c0_i32_0 : i32, i32
  }
  func.func @transform_4(%arg0: i32) -> (i32, i32) {
    %c0_i32 = arith.constant 0 : i32
    %c0_i32_0 = arith.constant 0 : i32
    %c0_i32_1 = arith.constant 0 : i32
    return %c0_i32, %c0_i32_0 : i32, i32
  }
  func.func @transform_5(%arg0: i32) -> (i32, i32) {
    %c0_i32 = arith.constant 0 : i32
    %c0_i32_0 = arith.constant 0 : i32
    %c0_i32_1 = arith.constant 0 : i32
    return %c0_i32, %c0_i32_0 : i32, i32
  }
  func.func @transform_6(%arg0: i32) -> (i32, i32) {
    %c0_i32 = arith.constant 0 : i32
    %c0_i32_0 = arith.constant 0 : i32
    %c0_i32_1 = arith.constant 0 : i32
    return %c0_i32, %c0_i32_0 : i32, i32
  }
  func.func @transform_7(%arg0: i32) -> (i32, i32) {
    %c0_i32 = arith.constant 0 : i32
    %c0_i32_0 = arith.constant 0 : i32
    return %arg0, %c0_i32 : i32, i32
  }
}

</mosaic_0001>

<llo_original>
// kernel: tpu_custom_call.1
$region0: #{tpu_custom_call.1}
  #allocation0 [shape = 'u32[]', space=smem, size = 0x4, offset = 0x4, fixed_abs, tag = 'smem constant byte address 0x4 - core index']
  #allocation1 [shape = 'u32[144,128]{1,0:T(1,128)}', space=vmem, size = 0x12000, scoped, tag = 'internal scratch']
  %s0 = inlined_call_operand.hbm [shape: f32[2,784], index: 0, kind: input, shape index: {}]
  %s1 = inlined_call_operand.hbm [shape: bf16[784,256], index: 1, kind: input, shape index: {}]
  %s2 = inlined_call_operand.vmem [shape: f32[1,256], index: 2, kind: input, shape index: {}]
  %s3 = inlined_call_operand.hbm [shape: bf16[256,128], index: 3, kind: input, shape index: {}]
  %s4 = inlined_call_operand.vmem [shape: f32[1,128], index: 4, kind: input, shape index: {}]
  %s5 = inlined_call_operand.hbm [shape: bf16[128,128], index: 5, kind: input, shape index: {}]
  %s6 = inlined_call_operand.vmem [shape: f32[1,128], index: 6, kind: input, shape index: {}]
  %s7 = inlined_call_operand.hbm [shape: bf16[2,128], index: 7, kind: output, shape index: {}]
  %s8 = sld [smem:[#allocation0]]
  $region54: #{tpu_custom_call.1} parent=0
    _
  %s10 = ssub.s32 1, %s8
  %s11 = scalar_select 0, %s10, %s8
  $region1: #{tpu_custom_call.1} parent=0
    #allocation2 [shape = 'u8[458752]{0}', space=vmem, size = 0x70000, scoped, tag = 'input window, operand 0, single buffered']
    #allocation3 [shape = 's32[1]{0}', space=sflag, size = 0x4, scoped, tag = 'scoped memory for tpu_custom_call.1']
    #allocation4 [shape = 's32[1]{0}', space=sflag, size = 0x4, scoped, tag = 'scoped memory for tpu_custom_call.1']
    #allocation5 [shape = 'u8[401408]{0}', space=vmem, size = 0x62000, scoped, tag = 'input window, operand 1, single buffered']
    #allocation6 [shape = 's32[1]{0}', space=sflag, size = 0x4, scoped, tag = 'scoped memory for tpu_custom_call.1']
    #allocation7 [shape = 'u8[65536]{0}', space=vmem, size = 0x10000, scoped, tag = 'input window, operand 3, single buffered']
    #allocation8 [shape = 'u8[32768]{0}', space=vmem, size = 0x8000, scoped, tag = 'input window, operand 5, single buffered']
    #allocation9 [shape = 's32[1]{0}', space=sflag, size = 0x4, scoped, tag = 'scoped memory for tpu_custom_call.1']
    #allocation10 [shape = 'u8[32768]{0}', space=vmem, size = 0x8000, scoped, tag = 'output window, operand 0, single buffered']
    %12 = vsyncpa [#allocation3], 0
    %13 = vsyncpa [#allocation6], 0
    %14 = vsyncpa [#allocation9], 0
    %15 = vsyncpa [#allocation4], 0
    // Predicated region
    $region2: #{tpu_custom_call.1} parent=1 // pred_check
      _
    $region3: #{tpu_custom_call.1} parent=1 // pred_check_branch
      %17 = sbr.rel (0) target = $region5
    $region4: #{tpu_custom_call.1} parent=1 // pred_region
      %s19 = ssub.s32 14336, 224
      %20 = vsyncadd [#allocation3], %s19
      %s21 = sshll.u32 [#allocation2], 4
      %s22 = int_to_ptr.vmem [resolvable:$true] %s21
      %27 = dma.hbm_to_vmem [thread:$0]  %s0, 224, %s22, [#allocation3], 224, 224, 14
    $region5: #{tpu_custom_call.1} parent=1 // pred_fallthru
      _
    // Predicated region
    $region6: #{tpu_custom_call.1} parent=1 // pred_check
      _
    $region7: #{tpu_custom_call.1} parent=1 // pred_check_branch
      %29 = sbr.rel (0) target = $region9
    $region8: #{tpu_custom_call.1} parent=1 // pred_region
      %s31 = ssub.s32 12544, 12544
      %32 = vsyncadd [#allocation6], %s31
      %s33 = sshll.u32 [#allocation5], 4
      %s34 = int_to_ptr.vmem [resolvable:$true] %s33
      %39 = dma.hbm_to_vmem [thread:$0]  %s1, 12544, %s34, [#allocation6], 128, 128, 8
    $region9: #{tpu_custom_call.1} parent=1 // pred_fallthru
      _
    // Predicated region
    $region10: #{tpu_custom_call.1} parent=1 // pred_check
      _
    $region11: #{tpu_custom_call.1} parent=1 // pred_check_branch
      %41 = sbr.rel (0) target = $region13
    $region12: #{tpu_custom_call.1} parent=1 // pred_region
      _
    $region13: #{tpu_custom_call.1} parent=1 // pred_fallthru
      _
    // Predicated region
    $region14: #{tpu_custom_call.1} parent=1 // pred_check
      _
    $region15: #{tpu_custom_call.1} parent=1 // pred_check_branch
      %43 = sbr.rel (0) target = $region17
    $region16: #{tpu_custom_call.1} parent=1 // pred_region
      %s45 = ssub.s32 2048, 2048
      %46 = vsyncadd [#allocation6], %s45
      %s47 = sshll.u32 [#allocation7], 4
      %s48 = int_to_ptr.vmem [resolvable:$true] %s47
      %53 = dma.hbm_to_vmem [thread:$0]  %s3, 2048, %s48, [#allocation6], 64, 64, 4
    $region17: #{tpu_custom_call.1} parent=1 // pred_fallthru
      _
    // Predicated region
    $region18: #{tpu_custom_call.1} parent=1 // pred_check
      _
    $region19: #{tpu_custom_call.1} parent=1 // pred_check_branch
      %55 = sbr.rel (0) target = $region21
    $region20: #{tpu_custom_call.1} parent=1 // pred_region
      _
    $region21: #{tpu_custom_call.1} parent=1 // pred_fallthru
      _
    // Predicated region
    $region22: #{tpu_custom_call.1} parent=1 // pred_check
      _
    $region23: #{tpu_custom_call.1} parent=1 // pred_check_branch
      %57 = sbr.rel (0) target = $region25
    $region24: #{tpu_custom_call.1} parent=1 // pred_region
      %s59 = ssub.s32 1024, 1024
      %60 = vsyncadd [#allocation9], %s59
      %s61 = sshll.u32 [#allocation8], 4
      %s62 = int_to_ptr.vmem [resolvable:$true] %s61
      %67 = dma.hbm_to_vmem [thread:$0]  %s5, 1024, %s62, [#allocation9], 64, 64, 4
    $region25: #{tpu_custom_call.1} parent=1 // pred_fallthru
      _
    // Predicated region
    $region26: #{tpu_custom_call.1} parent=1 // pred_check
      _
    $region27: #{tpu_custom_call.1} parent=1 // pred_check_branch
      %69 = sbr.rel (0) target = $region29
    $region28: #{tpu_custom_call.1} parent=1 // pred_region
      _
    $region29: #{tpu_custom_call.1} parent=1 // pred_fallthru
      _
    // Predicated region
    $region30: #{tpu_custom_call.1} parent=1 // pred_check
      _
    $region31: #{tpu_custom_call.1} parent=1 // pred_check_branch
      %71 = sbr.rel (0) target = $region33
    $region32: #{tpu_custom_call.1} parent=1 // pred_region
      %72 = dma.done [#allocation3], 14336
    $region33: #{tpu_custom_call.1} parent=1 // pred_fallthru
      _
    // Predicated region
    $region34: #{tpu_custom_call.1} parent=1 // pred_check
      _
    $region35: #{tpu_custom_call.1} parent=1 // pred_check_branch
      %74 = sbr.rel (0) target = $region37
    $region36: #{tpu_custom_call.1} parent=1 // pred_region
      %75 = dma.done [#allocation6], 12544
    $region37: #{tpu_custom_call.1} parent=1 // pred_fallthru
      _
    // Predicated region
    $region38: #{tpu_custom_call.1} parent=1 // pred_check
      _
    $region39: #{tpu_custom_call.1} parent=1 // pred_check_branch
      %77 = sbr.rel (0) target = $region41
    $region40: #{tpu_custom_call.1} parent=1 // pred_region
      %78 = dma.done [#allocation6], 2048
    $region41: #{tpu_custom_call.1} parent=1 // pred_fallthru
      _
    // Predicated region
    $region42: #{tpu_custom_call.1} parent=1 // pred_check
      _
    $region43: #{tpu_custom_call.1} parent=1 // pred_check_branch
      %80 = sbr.rel (0) target = $region45
    $region44: #{tpu_custom_call.1} parent=1 // pred_region
      %81 = dma.done [#allocation9], 1024
    $region45: #{tpu_custom_call.1} parent=1 // pred_fallthru
      _
    %v83 = vld [vmem:[#allocation2] sm:$0xff]
    %v84 = vld [vmem:[#allocation2 + $0x8] sm:$0x3f]
    %v85 = vld [vmem:[#allocation2 + $0xe] sm:$0xff]
    %v86 = vld [vmem:[#allocation2 + $0x16] sm:$0x3f]
    %v87 = vld [vmem:[#allocation2 + $0x1c] sm:$0xff]
    %v88 = vld [vmem:[#allocation2 + $0x24] sm:$0x3f]
    %v89 = vld [vmem:[#allocation2 + $0x2a] sm:$0xff]
    %v90 = vld [vmem:[#allocation2 + $0x32] sm:$0x3f]
    %v91 = vld [vmem:[#allocation2 + $0x38] sm:$0xff]
    %v92 = vld [vmem:[#allocation2 + $0x40] sm:$0x3f]
    %v93 = vld [vmem:[#allocation2 + $0x46] sm:$0xff]
    %v94 = vld [vmem:[#allocation2 + $0x4e] sm:$0x3f]
    %v95 = vld [vmem:[#allocation2 + $0x54] sm:$0xff]
    %v96 = vld [vmem:[#allocation2 + $0x5c] sm:$0x3f]
    %v97 = vld [vmem:[#allocation2 + $0x62] sm:$0xff]
    %v98 = vld [vmem:[#allocation2 + $0x6a] sm:$0x3f]
    %v99 = vld [vmem:[#allocation2 + $0x70] sm:$0xff]
    %v100 = vld [vmem:[#allocation2 + $0x78] sm:$0x3f]
    %v101 = vld [vmem:[#allocation2 + $0x7e] sm:$0xff]
    %v102 = vld [vmem:[#allocation2 + $0x86] sm:$0x3f]
    %v103 = vld [vmem:[#allocation2 + $0x8c] sm:$0xff]
    %v104 = vld [vmem:[#allocation2 + $0x94] sm:$0x3f]
    %v105 = vld [vmem:[#allocation2 + $0x9a] sm:$0xff]
    %v106 = vld [vmem:[#allocation2 + $0xa2] sm:$0x3f]
    %v107 = vld [vmem:[#allocation2 + $0xa8] sm:$0xff]
    %v108 = vld [vmem:[#allocation2 + $0xb0] sm:$0x3f]
    %v109 = vld [vmem:[#allocation2 + $0xb6] sm:$0xff]
    %v110 = vld [vmem:[#allocation2 + $0xbe] sm:$0x3f]
    %v111 = vld [vmem:[#allocation2 + $0xc4] sm:$0xff]
    %v112 = vld [vmem:[#allocation2 + $0xcc] sm:$0x3f]
    %v113 = vld [vmem:[#allocation2 + $0xd2] sm:$0xff]
    %v114 = vld [vmem:[#allocation2 + $0xda] sm:$0x3f]
    %v115 = vld [vmem:[#allocation2 + $0xe0] sm:$0xff]
    %v116 = vld [vmem:[#allocation2 + $0xe8] sm:$0x3f]
    %v117 = vld [vmem:[#allocation2 + $0xee] sm:$0xff]
    %v118 = vld [vmem:[#allocation2 + $0xf6] sm:$0x3f]
    %v119 = vld [vmem:[#allocation2 + $0xfc] sm:$0xff]
    %v120 = vld [vmem:[#allocation2 + $0x104] sm:$0x3f]
    %v121 = vld [vmem:[#allocation2 + $0x10a] sm:$0xff]
    %v122 = vld [vmem:[#allocation2 + $0x112] sm:$0x3f]
    %v123 = vld [vmem:[#allocation2 + $0x118] sm:$0xff]
    %v124 = vld [vmem:[#allocation2 + $0x120] sm:$0x3f]
    %v125 = vld [vmem:[#allocation2 + $0x126] sm:$0xff]
    %v126 = vld [vmem:[#allocation2 + $0x12e] sm:$0x3f]
    %v127 = vld [vmem:[#allocation2 + $0x134] sm:$0xff]
    %v128 = vld [vmem:[#allocation2 + $0x13c] sm:$0x3f]
    %v129 = vld [vmem:[#allocation2 + $0x142] sm:$0xff]
    %v130 = vld [vmem:[#allocation2 + $0x14a] sm:$0x3f]
    %v131 = vld [vmem:[#allocation2 + $0x150] sm:$0xff]
    %v132 = vld [vmem:[#allocation2 + $0x158] sm:$0x3f]
    %v133 = vld [vmem:[#allocation2 + $0x15e] sm:$0xff]
    %v134 = vld [vmem:[#allocation2 + $0x166] sm:$0x3f]
    %v135 = vld [vmem:[#allocation2 + $0x16c] sm:$0xff]
    %v136 = vld [vmem:[#allocation2 + $0x174] sm:$0x3f]
    %v137 = vld [vmem:[#allocation2 + $0x17a] sm:$0xff]
    %v138 = vld [vmem:[#allocation2 + $0x182] sm:$0x3f]
    %v139 = vld [vmem:[#allocation2 + $0x188] sm:$0xff]
    %v140 = vld [vmem:[#allocation2 + $0x190] sm:$0x3f]
    %v141 = vld [vmem:[#allocation2 + $0x196] sm:$0xff]
    %v142 = vld [vmem:[#allocation2 + $0x19e] sm:$0x3f]
    %v143 = vld [vmem:[#allocation2 + $0x1a4] sm:$0xff]
    %v144 = vld [vmem:[#allocation2 + $0x1ac] sm:$0x3f]
    %v145 = vld [vmem:[#allocation2 + $0x1b2] sm:$0xff]
    %v146 = vld [vmem:[#allocation2 + $0x1ba] sm:$0x3f]
    %v147 = vld [vmem:[#allocation2 + $0x1c0] sm:$0xff]
    %v148 = vld [vmem:[#allocation2 + $0x1c8] sm:$0x3f]
    %v149 = vld [vmem:[#allocation2 + $0x1ce] sm:$0xff]
    %v150 = vld [vmem:[#allocation2 + $0x1d6] sm:$0x3f]
    %v151 = vld [vmem:[#allocation2 + $0x1dc] sm:$0xff]
    %v152 = vld [vmem:[#allocation2 + $0x1e4] sm:$0x3f]
    %v153 = vld [vmem:[#allocation2 + $0x1ea] sm:$0xff]
    %v154 = vld [vmem:[#allocation2 + $0x1f2] sm:$0x3f]
    %v155 = vld [vmem:[#allocation2 + $0x1f8] sm:$0xff]
    %v156 = vld [vmem:[#allocation2 + $0x200] sm:$0x3f]
    %v157 = vld [vmem:[#allocation2 + $0x206] sm:$0xff]
    %v158 = vld [vmem:[#allocation2 + $0x20e] sm:$0x3f]
    %v159 = vld [vmem:[#allocation2 + $0x214] sm:$0xff]
    %v160 = vld [vmem:[#allocation2 + $0x21c] sm:$0x3f]
    %v161 = vld [vmem:[#allocation2 + $0x222] sm:$0xff]
    %v162 = vld [vmem:[#allocation2 + $0x22a] sm:$0x3f]
    %v163 = vld [vmem:[#allocation2 + $0x230] sm:$0xff]
    %v164 = vld [vmem:[#allocation2 + $0x238] sm:$0x3f]
    %v165 = vld [vmem:[#allocation2 + $0x23e] sm:$0xff]
    %v166 = vld [vmem:[#allocation2 + $0x246] sm:$0x3f]
    %v167 = vld [vmem:[#allocation2 + $0x24c] sm:$0xff]
    %v168 = vld [vmem:[#allocation2 + $0x254] sm:$0x3f]
    %v169 = vld [vmem:[#allocation2 + $0x25a] sm:$0xff]
    %v170 = vld [vmem:[#allocation2 + $0x262] sm:$0x3f]
    %v171 = vld [vmem:[#allocation2 + $0x268] sm:$0xff]
    %v172 = vld [vmem:[#allocation2 + $0x270] sm:$0x3f]
    %v173 = vld [vmem:[#allocation2 + $0x276] sm:$0xff]
    %v174 = vld [vmem:[#allocation2 + $0x27e] sm:$0x3f]
    %v175 = vld [vmem:[#allocation2 + $0x284] sm:$0xff]
    %v176 = vld [vmem:[#allocation2 + $0x28c] sm:$0x3f]
    %v177 = vld [vmem:[#allocation2 + $0x292] sm:$0xff]
    %v178 = vld [vmem:[#allocation2 + $0x29a] sm:$0x3f]
    %v179 = vld [vmem:[#allocation2 + $0x2a0] sm:$0xff]
    %v180 = vld [vmem:[#allocation2 + $0x2a8] sm:$0x3f]
    %v181 = vld [vmem:[#allocation2 + $0x2ae] sm:$0xff]
    %v182 = vld [vmem:[#allocation2 + $0x2b6] sm:$0x3f]
    %v183 = vld [vmem:[#allocation2 + $0x2bc] sm:$0xff]
    %v184 = vld [vmem:[#allocation2 + $0x2c4] sm:$0x3f]
    %v185 = vld [vmem:[#allocation2 + $0x2ca] sm:$0xff]
    %v186 = vld [vmem:[#allocation2 + $0x2d2] sm:$0x3f]
    %v187 = vld [vmem:[#allocation2 + $0x2d8] sm:$0xff]
    %v188 = vld [vmem:[#allocation2 + $0x2e0] sm:$0x3f]
    %v189 = vld [vmem:[#allocation2 + $0x2e6] sm:$0xff]
    %v190 = vld [vmem:[#allocation2 + $0x2ee] sm:$0x3f]
    %v191 = vld [vmem:[#allocation2 + $0x2f4] sm:$0xff]
    %v192 = vld [vmem:[#allocation2 + $0x2fc] sm:$0x3f]
    %v193 = vld [vmem:[#allocation2 + $0x302] sm:$0xff]
    %v194 = vld [vmem:[#allocation2 + $0x30a] sm:$0x3f]
    %v195 = vld [vmem:[#allocation2 + $0x310] sm:$0xff]
    %v196 = vld [vmem:[#allocation2 + $0x318] sm:$0x3f]
    %v197 = vld [vmem:[#allocation2 + $0x31e] sm:$0xff]
    %v198 = vld [vmem:[#allocation2 + $0x326] sm:$0x3f]
    %v199 = vld [vmem:[#allocation2 + $0x32c] sm:$0xff]
    %v200 = vld [vmem:[#allocation2 + $0x334] sm:$0x3f]
    %v201 = vld [vmem:[#allocation2 + $0x33a] sm:$0xff]
    %v202 = vld [vmem:[#allocation2 + $0x342] sm:$0x3f]
    %v203 = vld [vmem:[#allocation2 + $0x348] sm:$0xff]
    %v204 = vld [vmem:[#allocation2 + $0x350] sm:$0x3f]
    %v205 = vld [vmem:[#allocation2 + $0x356] sm:$0xff]
    %v206 = vld [vmem:[#allocation2 + $0x35e] sm:$0x3f]
    %v207 = vld [vmem:[#allocation2 + $0x364] sm:$0xff]
    %v208 = vld [vmem:[#allocation2 + $0x36c] sm:$0x3f]
    %v209 = vld [vmem:[#allocation2 + $0x372] sm:$0xff]
    %v210 = vld [vmem:[#allocation2 + $0x37a] sm:$0x3f]
    %v339 = vcombine.low %v83, %v85
    %v340 = vcombine.high %v83, %v85
    %v341 = vcombine.low %v87, %v89
    %v342 = vcombine.high %v87, %v89
    %v344 = vunpack.c.l.s4 1983009808
    %v345 = vunpack.c.0.s8 %v344
    %v346 = vlaneseq
    %v347 = vshrl.u32 %v346, 7
    %v348 = vsub.s32 %v345, %v347
    %v349 = vrot.slane %v339, %v348
    %v351 = vunpack.c.l.s4 1983009808
    %v352 = vunpack.c.0.s8 %v351
    %v353 = vlaneseq
    %v354 = vshrl.u32 %v353, 7
    %v355 = vsub.s32 %v352, %v354
    %v356 = vrot.slane %v340, %v355
    %v358 = vunpack.c.l.s4 1983009808
    %v359 = vunpack.c.0.s8 %v358
    %v360 = vlaneseq
    %v361 = vshrl.u32 %v360, 7
    %v362 = vsub.s32 %v359, %v361
    %v363 = vrot.slane %v341, %v362
    %v365 = vunpack.c.l.s4 1983009808
    %v366 = vunpack.c.0.s8 %v365
    %v367 = vlaneseq
    %v368 = vshrl.u32 %v367, 7
    %v369 = vsub.s32 %v366, %v368
    %v370 = vrot.slane %v342, %v369
    %v371 = vcombine.low %v349, %v363
    %v372 = vcombine.high %v349, %v363
    %v373 = vcombine.low %v356, %v370
    %v374 = vcombine.high %v356, %v370
    %v375 = vcombine.low %v84, %v86
    %v376 = vcombine.high %v84, %v86
    %v377 = vcombine.low %v88, %v90
    %v378 = vcombine.high %v88, %v90
    %v380 = vunpack.c.l.s4 1983009808
    %v381 = vunpack.c.0.s8 %v380
    %v382 = vlaneseq
    %v383 = vshrl.u32 %v382, 7
    %v384 = vsub.s32 %v381, %v383
    %v385 = vrot.slane %v375, %v384
    %v387 = vunpack.c.l.s4 1983009808
    %v388 = vunpack.c.0.s8 %v387
    %v389 = vlaneseq
    %v390 = vshrl.u32 %v389, 7
    %v391 = vsub.s32 %v388, %v390
    %v392 = vrot.slane %v376, %v391
    %v394 = vunpack.c.l.s4 1983009808
    %v395 = vunpack.c.0.s8 %v394
    %v396 = vlaneseq
    %v397 = vshrl.u32 %v396, 7
    %v398 = vsub.s32 %v395, %v397
    %v399 = vrot.slane %v377, %v398
    %v401 = vunpack.c.l.s4 1983009808
    %v402 = vunpack.c.0.s8 %v401
    %v403 = vlaneseq
    %v404 = vshrl.u32 %v403, 7
    %v405 = vsub.s32 %v402, %v404
    %v406 = vrot.slane %v378, %v405
    %v407 = vcombine.low %v385, %v399
    %v408 = vcombine.high %v385, %v399
    %v409 = vcombine.low %v392, %v406
    %v410 = vcombine.low %v91, %v93
    %v411 = vcombine.high %v91, %v93
    %v412 = vcombine.low %v95, %v97
    %v413 = vcombine.high %v95, %v97
    %v415 = vunpack.c.l.s4 1983009808
    %v416 = vunpack.c.0.s8 %v415
    %v417 = vlaneseq
    %v418 = vshrl.u32 %v417, 7
    %v419 = vsub.s32 %v416, %v418
    %v420 = vrot.slane %v410, %v419
    %v422 = vunpack.c.l.s4 1983009808
    %v423 = vunpack.c.0.s8 %v422
    %v424 = vlaneseq
    %v425 = vshrl.u32 %v424, 7
    %v426 = vsub.s32 %v423, %v425
    %v427 = vrot.slane %v411, %v426
    %v429 = vunpack.c.l.s4 1983009808
    %v430 = vunpack.c.0.s8 %v429
    %v431 = vlaneseq
    %v432 = vshrl.u32 %v431, 7
    %v433 = vsub.s32 %v430, %v432
    %v434 = vrot.slane %v412, %v433
    %v436 = vunpack.c.l.s4 1983009808
    %v437 = vunpack.c.0.s8 %v436
    %v438 = vlaneseq
    %v439 = vshrl.u32 %v438, 7
    %v440 = vsub.s32 %v437, %v439
    %v441 = vrot.slane %v413, %v440
    %v442 = vcombine.low %v420, %v434
    %v443 = vcombine.high %v420, %v434
    %v444 = vcombine.low %v427, %v441
    %v445 = vcombine.high %v427, %v441
    %v446 = vcombine.low %v92, %v94
    %v447 = vcombine.high %v92, %v94
    %v448 = vcombine.low %v96, %v98
    %v449 = vcombine.high %v96, %v98
    %v451 = vunpack.c.l.s4 1983009808
    %v452 = vunpack.c.0.s8 %v451
    %v453 = vlaneseq
    %v454 = vshrl.u32 %v453, 7
    %v455 = vsub.s32 %v452, %v454
    %v456 = vrot.slane %v446, %v455
    %v458 = vunpack.c.l.s4 1983009808
    %v459 = vunpack.c.0.s8 %v458
    %v460 = vlaneseq
    %v461 = vshrl.u32 %v460, 7
    %v462 = vsub.s32 %v459, %v461
    %v463 = vrot.slane %v447, %v462
    %v465 = vunpack.c.l.s4 1983009808
    %v466 = vunpack.c.0.s8 %v465
    %v467 = vlaneseq
    %v468 = vshrl.u32 %v467, 7
    %v469 = vsub.s32 %v466, %v468
    %v470 = vrot.slane %v448, %v469
    %v472 = vunpack.c.l.s4 1983009808
    %v473 = vunpack.c.0.s8 %v472
    %v474 = vlaneseq
    %v475 = vshrl.u32 %v474, 7
    %v476 = vsub.s32 %v473, %v475
    %v477 = vrot.slane %v449, %v476
    %v478 = vcombine.low %v456, %v470
    %v479 = vcombine.high %v456, %v470
    %v480 = vcombine.low %v463, %v477
    %v481 = vcombine.low %v99, %v101
    %v482 = vcombine.high %v99, %v101
    %v483 = vcombine.low %v103, %v105
    %v484 = vcombine.high %v103, %v105
    %v486 = vunpack.c.l.s4 1983009808
    %v487 = vunpack.c.0.s8 %v486
    %v488 = vlaneseq
    %v489 = vshrl.u32 %v488, 7
    %v490 = vsub.s32 %v487, %v489
    %v491 = vrot.slane %v481, %v490
    %v493 = vunpack.c.l.s4 1983009808
    %v494 = vunpack.c.0.s8 %v493
    %v495 = vlaneseq
    %v496 = vshrl.u32 %v495, 7
    %v497 = vsub.s32 %v494, %v496
    %v498 = vrot.slane %v482, %v497
    %v500 = vunpack.c.l.s4 1983009808
    %v501 = vunpack.c.0.s8 %v500
    %v502 = vlaneseq
    %v503 = vshrl.u32 %v502, 7
    %v504 = vsub.s32 %v501, %v503
    %v505 = vrot.slane %v483, %v504
    %v507 = vunpack.c.l.s4 1983009808
    %v508 = vunpack.c.0.s8 %v507
    %v509 = vlaneseq
    %v510 = vshrl.u32 %v509, 7
    %v511 = vsub.s32 %v508, %v510
    %v512 = vrot.slane %v484, %v511
    %v513 = vcombine.low %v491, %v505
    %v514 = vcombine.high %v491, %v505
    %v515 = vcombine.low %v498, %v512
    %v516 = vcombine.high %v498, %v512
    %v517 = vcombine.low %v100, %v102
    %v518 = vcombine.high %v100, %v102
    %v519 = vcombine.low %v104, %v106
    %v520 = vcombine.high %v104, %v106
    %v522 = vunpack.c.l.s4 1983009808
    %v523 = vunpack.c.0.s8 %v522
    %v524 = vlaneseq
    %v525 = vshrl.u32 %v524, 7
    %v526 = vsub.s32 %v523, %v525
    %v527 = vrot.slane %v517, %v526
    %v529 = vunpack.c.l.s4 1983009808
    %v530 = vunpack.c.0.s8 %v529
    %v531 = vlaneseq
    %v532 = vshrl.u32 %v531, 7
    %v533 = vsub.s32 %v530, %v532
    %v534 = vrot.slane %v518, %v533
    %v536 = vunpack.c.l.s4 1983009808
    %v537 = vunpack.c.0.s8 %v536
    %v538 = vlaneseq
    %v539 = vshrl.u32 %v538, 7
    %v540 = vsub.s32 %v537, %v539
    %v541 = vrot.slane %v519, %v540
    %v543 = vunpack.c.l.s4 1983009808
    %v544 = vunpack.c.0.s8 %v543
    %v545 = vlaneseq
    %v546 = vshrl.u32 %v545, 7
    %v547 = vsub.s32 %v544, %v546
    %v548 = vrot.slane %v520, %v547
    %v549 = vcombine.low %v527, %v541
    %v550 = vcombine.high %v527, %v541
    %v551 = vcombine.low %v534, %v548
    %v552 = vcombine.low %v107, %v109
    %v553 = vcombine.high %v107, %v109
    %v554 = vcombine.low %v111, %v113
    %v555 = vcombine.high %v111, %v113
    %v557 = vunpack.c.l.s4 1983009808
    %v558 = vunpack.c.0.s8 %v557
    %v559 = vlaneseq
    %v560 = vshrl.u32 %v559, 7
    %v561 = vsub.s32 %v558, %v560
    %v562 = vrot.slane %v552, %v561
    %v564 = vunpack.c.l.s4 1983009808
    %v565 = vunpack.c.0.s8 %v564
    %v566 = vlaneseq
    %v567 = vshrl.u32 %v566, 7
    %v568 = vsub.s32 %v565, %v567
    %v569 = vrot.slane %v553, %v568
    %v571 = vunpack.c.l.s4 1983009808
    %v572 = vunpack.c.0.s8 %v571
    %v573 = vlaneseq
    %v574 = vshrl.u32 %v573, 7
    %v575 = vsub.s32 %v572, %v574
    %v576 = vrot.slane %v554, %v575
    %v578 = vunpack.c.l.s4 1983009808
    %v579 = vunpack.c.0.s8 %v578
    %v580 = vlaneseq
    %v581 = vshrl.u32 %v580, 7
    %v582 = vsub.s32 %v579, %v581
    %v583 = vrot.slane %v555, %v582
    %v584 = vcombine.low %v562, %v576
    %v585 = vcombine.high %v562, %v576
    %v586 = vcombine.low %v569, %v583
    %v587 = vcombine.high %v569, %v583
    %v588 = vcombine.low %v108, %v110
    %v589 = vcombine.high %v108, %v110
    %v590 = vcombine.low %v112, %v114
    %v591 = vcombine.high %v112, %v114
    %v593 = vunpack.c.l.s4 1983009808
    %v594 = vunpack.c.0.s8 %v593
    %v595 = vlaneseq
    %v596 = vshrl.u32 %v595, 7
    %v597 = vsub.s32 %v594, %v596
    %v598 = vrot.slane %v588, %v597
    %v600 = vunpack.c.l.s4 1983009808
    %v601 = vunpack.c.0.s8 %v600
    %v602 = vlaneseq
    %v603 = vshrl.u32 %v602, 7
    %v604 = vsub.s32 %v601, %v603
    %v605 = vrot.slane %v589, %v604
    %v607 = vunpack.c.l.s4 1983009808
    %v608 = vunpack.c.0.s8 %v607
    %v609 = vlaneseq
    %v610 = vshrl.u32 %v609, 7
    %v611 = vsub.s32 %v608, %v610
    %v612 = vrot.slane %v590, %v611
    %v614 = vunpack.c.l.s4 1983009808
    %v615 = vunpack.c.0.s8 %v614
    %v616 = vlaneseq
    %v617 = vshrl.u32 %v616, 7
    %v618 = vsub.s32 %v615, %v617
    %v619 = vrot.slane %v591, %v618
    %v620 = vcombine.low %v598, %v612
    %v621 = vcombine.high %v598, %v612
    %v622 = vcombine.low %v605, %v619
    %v623 = vcombine.low %v115, %v117
    %v624 = vcombine.high %v115, %v117
    %v625 = vcombine.low %v119, %v121
    %v626 = vcombine.high %v119, %v121
    %v628 = vunpack.c.l.s4 1983009808
    %v629 = vunpack.c.0.s8 %v628
    %v630 = vlaneseq
    %v631 = vshrl.u32 %v630, 7
    %v632 = vsub.s32 %v629, %v631
    %v633 = vrot.slane %v623, %v632
    %v635 = vunpack.c.l.s4 1983009808
    %v636 = vunpack.c.0.s8 %v635
    %v637 = vlaneseq
    %v638 = vshrl.u32 %v637, 7
    %v639 = vsub.s32 %v636, %v638
    %v640 = vrot.slane %v624, %v639
    %v642 = vunpack.c.l.s4 1983009808
    %v643 = vunpack.c.0.s8 %v642
    %v644 = vlaneseq
    %v645 = vshrl.u32 %v644, 7
    %v646 = vsub.s32 %v643, %v645
    %v647 = vrot.slane %v625, %v646
    %v649 = vunpack.c.l.s4 1983009808
    %v650 = vunpack.c.0.s8 %v649
    %v651 = vlaneseq
    %v652 = vshrl.u32 %v651, 7
    %v653 = vsub.s32 %v650, %v652
    %v654 = vrot.slane %v626, %v653
    %v655 = vcombine.low %v633, %v647
    %v656 = vcombine.high %v633, %v647
    %v657 = vcombine.low %v640, %v654
    %v658 = vcombine.high %v640, %v654
    %v659 = vcombine.low %v116, %v118
    %v660 = vcombine.high %v116, %v118
    %v661 = vcombine.low %v120, %v122
    %v662 = vcombine.high %v120, %v122
    %v664 = vunpack.c.l.s4 1983009808
    %v665 = vunpack.c.0.s8 %v664
    %v666 = vlaneseq
    %v667 = vshrl.u32 %v666, 7
    %v668 = vsub.s32 %v665, %v667
    %v669 = vrot.slane %v659, %v668
    %v671 = vunpack.c.l.s4 1983009808
    %v672 = vunpack.c.0.s8 %v671
    %v673 = vlaneseq
    %v674 = vshrl.u32 %v673, 7
    %v675 = vsub.s32 %v672, %v674
    %v676 = vrot.slane %v660, %v675
    %v678 = vunpack.c.l.s4 1983009808
    %v679 = vunpack.c.0.s8 %v678
    %v680 = vlaneseq
    %v681 = vshrl.u32 %v680, 7
    %v682 = vsub.s32 %v679, %v681
    %v683 = vrot.slane %v661, %v682
    %v685 = vunpack.c.l.s4 1983009808
    %v686 = vunpack.c.0.s8 %v685
    %v687 = vlaneseq
    %v688 = vshrl.u32 %v687, 7
    %v689 = vsub.s32 %v686, %v688
    %v690 = vrot.slane %v662, %v689
    %v691 = vcombine.low %v669, %v683
    %v692 = vcombine.high %v669, %v683
    %v693 = vcombine.low %v676, %v690
    %v694 = vcombine.low %v123, %v125
    %v695 = vcombine.high %v123, %v125
    %v696 = vcombine.low %v127, %v129
    %v697 = vcombine.high %v127, %v129
    %v699 = vunpack.c.l.s4 1983009808
    %v700 = vunpack.c.0.s8 %v699
    %v701 = vlaneseq
    %v702 = vshrl.u32 %v701, 7
    %v703 = vsub.s32 %v700, %v702
    %v704 = vrot.slane %v694, %v703
    %v706 = vunpack.c.l.s4 1983009808
    %v707 = vunpack.c.0.s8 %v706
    %v708 = vlaneseq
    %v709 = vshrl.u32 %v708, 7
    %v710 = vsub.s32 %v707, %v709
    %v711 = vrot.slane %v695, %v710
    %v713 = vunpack.c.l.s4 1983009808
    %v714 = vunpack.c.0.s8 %v713
    %v715 = vlaneseq
    %v716 = vshrl.u32 %v715, 7
    %v717 = vsub.s32 %v714, %v716
    %v718 = vrot.slane %v696, %v717
    %v720 = vunpack.c.l.s4 1983009808
    %v721 = vunpack.c.0.s8 %v720
    %v722 = vlaneseq
    %v723 = vshrl.u32 %v722, 7
    %v724 = vsub.s32 %v721, %v723
    %v725 = vrot.slane %v697, %v724
    %v726 = vcombine.low %v704, %v718
    %v727 = vcombine.high %v704, %v718
    %v728 = vcombine.low %v711, %v725
    %v729 = vcombine.high %v711, %v725
    %v730 = vcombine.low %v124, %v126
    %v731 = vcombine.high %v124, %v126
    %v732 = vcombine.low %v128, %v130
    %v733 = vcombine.high %v128, %v130
    %v735 = vunpack.c.l.s4 1983009808
    %v736 = vunpack.c.0.s8 %v735
    %v737 = vlaneseq
    %v738 = vshrl.u32 %v737, 7
    %v739 = vsub.s32 %v736, %v738
    %v740 = vrot.slane %v730, %v739
    %v742 = vunpack.c.l.s4 1983009808
    %v743 = vunpack.c.0.s8 %v742
    %v744 = vlaneseq
    %v745 = vshrl.u32 %v744, 7
    %v746 = vsub.s32 %v743, %v745
    %v747 = vrot.slane %v731, %v746
    %v749 = vunpack.c.l.s4 1983009808
    %v750 = vunpack.c.0.s8 %v749
    %v751 = vlaneseq
    %v752 = vshrl.u32 %v751, 7
    %v753 = vsub.s32 %v750, %v752
    %v754 = vrot.slane %v732, %v753
    %v756 = vunpack.c.l.s4 1983009808
    %v757 = vunpack.c.0.s8 %v756
    %v758 = vlaneseq
    %v759 = vshrl.u32 %v758, 7
    %v760 = vsub.s32 %v757, %v759
    %v761 = vrot.slane %v733, %v760
    %v762 = vcombine.low %v740, %v754
    %v763 = vcombine.high %v740, %v754
    %v764 = vcombine.low %v747, %v761
    %v765 = vcombine.low %v131, %v133
    %v766 = vcombine.high %v131, %v133
    %v767 = vcombine.low %v135, %v137
    %v768 = vcombine.high %v135, %v137
    %v770 = vunpack.c.l.s4 1983009808
    %v771 = vunpack.c.0.s8 %v770
    %v772 = vlaneseq
    %v773 = vshrl.u32 %v772, 7
    %v774 = vsub.s32 %v771, %v773
    %v775 = vrot.slane %v765, %v774
    %v777 = vunpack.c.l.s4 1983009808
    %v778 = vunpack.c.0.s8 %v777
    %v779 = vlaneseq
    %v780 = vshrl.u32 %v779, 7
    %v781 = vsub.s32 %v778, %v780
    %v782 = vrot.slane %v766, %v781
    %v784 = vunpack.c.l.s4 1983009808
    %v785 = vunpack.c.0.s8 %v784
    %v786 = vlaneseq
    %v787 = vshrl.u32 %v786, 7
    %v788 = vsub.s32 %v785, %v787
    %v789 = vrot.slane %v767, %v788
    %v791 = vunpack.c.l.s4 1983009808
    %v792 = vunpack.c.0.s8 %v791
    %v793 = vlaneseq
    %v794 = vshrl.u32 %v793, 7
    %v795 = vsub.s32 %v792, %v794
    %v796 = vrot.slane %v768, %v795
    %v797 = vcombine.low %v775, %v789
    %v798 = vcombine.high %v775, %v789
    %v799 = vcombine.low %v782, %v796
    %v800 = vcombine.high %v782, %v796
    %v801 = vcombine.low %v132, %v134
    %v802 = vcombine.high %v132, %v134
    %v803 = vcombine.low %v136, %v138
    %v804 = vcombine.high %v136, %v138
    %v806 = vunpack.c.l.s4 1983009808
    %v807 = vunpack.c.0.s8 %v806
    %v808 = vlaneseq
    %v809 = vshrl.u32 %v808, 7
    %v810 = vsub.s32 %v807, %v809
    %v811 = vrot.slane %v801, %v810
    %v813 = vunpack.c.l.s4 1983009808
    %v814 = vunpack.c.0.s8 %v813
    %v815 = vlaneseq
    %v816 = vshrl.u32 %v815, 7
    %v817 = vsub.s32 %v814, %v816
    %v818 = vrot.slane %v802, %v817
    %v820 = vunpack.c.l.s4 1983009808
    %v821 = vunpack.c.0.s8 %v820
    %v822 = vlaneseq
    %v823 = vshrl.u32 %v822, 7
    %v824 = vsub.s32 %v821, %v823
    %v825 = vrot.slane %v803, %v824
    %v827 = vunpack.c.l.s4 1983009808
    %v828 = vunpack.c.0.s8 %v827
    %v829 = vlaneseq
    %v830 = vshrl.u32 %v829, 7
    %v831 = vsub.s32 %v828, %v830
    %v832 = vrot.slane %v804, %v831
    %v833 = vcombine.low %v811, %v825
    %v834 = vcombine.high %v811, %v825
    %v835 = vcombine.low %v818, %v832
    %v836 = vcombine.low %v139, %v141
    %v837 = vcombine.high %v139, %v141
    %v838 = vcombine.low %v143, %v145
    %v839 = vcombine.high %v143, %v145
    %v841 = vunpack.c.l.s4 1983009808
    %v842 = vunpack.c.0.s8 %v841
    %v843 = vlaneseq
    %v844 = vshrl.u32 %v843, 7
    %v845 = vsub.s32 %v842, %v844
    %v846 = vrot.slane %v836, %v845
    %v848 = vunpack.c.l.s4 1983009808
    %v849 = vunpack.c.0.s8 %v848
    %v850 = vlaneseq
    %v851 = vshrl.u32 %v850, 7
    %v852 = vsub.s32 %v849, %v851
    %v853 = vrot.slane %v837, %v852
    %v855 = vunpack.c.l.s4 1983009808
    %v856 = vunpack.c.0.s8 %v855
    %v857 = vlaneseq
    %v858 = vshrl.u32 %v857, 7
    %v859 = vsub.s32 %v856, %v858
    %v860 = vrot.slane %v838, %v859
    %v862 = vunpack.c.l.s4 1983009808
    %v863 = vunpack.c.0.s8 %v862
    %v864 = vlaneseq
    %v865 = vshrl.u32 %v864, 7
    %v866 = vsub.s32 %v863, %v865
    %v867 = vrot.slane %v839, %v866
    %v868 = vcombine.low %v846, %v860
    %v869 = vcombine.high %v846, %v860
    %v870 = vcombine.low %v853, %v867
    %v871 = vcombine.high %v853, %v867
    %v872 = vcombine.low %v140, %v142
    %v873 = vcombine.high %v140, %v142
    %v874 = vcombine.low %v144, %v146
    %v875 = vcombine.high %v144, %v146
    %v877 = vunpack.c.l.s4 1983009808
    %v878 = vunpack.c.0.s8 %v877
    %v879 = vlaneseq
    %v880 = vshrl.u32 %v879, 7
    %v881 = vsub.s32 %v878, %v880
    %v882 = vrot.slane %v872, %v881
    %v884 = vunpack.c.l.s4 1983009808
    %v885 = vunpack.c.0.s8 %v884
    %v886 = vlaneseq
    %v887 = vshrl.u32 %v886, 7
    %v888 = vsub.s32 %v885, %v887
    %v889 = vrot.slane %v873, %v888
    %v891 = vunpack.c.l.s4 1983009808
    %v892 = vunpack.c.0.s8 %v891
    %v893 = vlaneseq
    %v894 = vshrl.u32 %v893, 7
    %v895 = vsub.s32 %v892, %v894
    %v896 = vrot.slane %v874, %v895
    %v898 = vunpack.c.l.s4 1983009808
    %v899 = vunpack.c.0.s8 %v898
    %v900 = vlaneseq
    %v901 = vshrl.u32 %v900, 7
    %v902 = vsub.s32 %v899, %v901
    %v903 = vrot.slane %v875, %v902
    %v904 = vcombine.low %v882, %v896
    %v905 = vcombine.high %v882, %v896
    %v906 = vcombine.low %v889, %v903
    %v907 = vcombine.low %v147, %v149
    %v908 = vcombine.high %v147, %v149
    %v909 = vcombine.low %v151, %v153
    %v910 = vcombine.high %v151, %v153
    %v912 = vunpack.c.l.s4 1983009808
    %v913 = vunpack.c.0.s8 %v912
    %v914 = vlaneseq
    %v915 = vshrl.u32 %v914, 7
    %v916 = vsub.s32 %v913, %v915
    %v917 = vrot.slane %v907, %v916
    %v919 = vunpack.c.l.s4 1983009808
    %v920 = vunpack.c.0.s8 %v919
    %v921 = vlaneseq
    %v922 = vshrl.u32 %v921, 7
    %v923 = vsub.s32 %v920, %v922
    %v924 = vrot.slane %v908, %v923
    %v926 = vunpack.c.l.s4 1983009808
    %v927 = vunpack.c.0.s8 %v926
    %v928 = vlaneseq
    %v929 = vshrl.u32 %v928, 7
    %v930 = vsub.s32 %v927, %v929
    %v931 = vrot.slane %v909, %v930
    %v933 = vunpack.c.l.s4 1983009808
    %v934 = vunpack.c.0.s8 %v933
    %v935 = vlaneseq
    %v936 = vshrl.u32 %v935, 7
    %v937 = vsub.s32 %v934, %v936
    %v938 = vrot.slane %v910, %v937
    %v939 = vcombine.low %v917, %v931
    %v940 = vcombine.high %v917, %v931
    %v941 = vcombine.low %v924, %v938
    %v942 = vcombine.high %v924, %v938
    %v943 = vcombine.low %v148, %v150
    %v944 = vcombine.high %v148, %v150
    %v945 = vcombine.low %v152, %v154
    %v946 = vcombine.high %v152, %v154
    %v948 = vunpack.c.l.s4 1983009808
    %v949 = vunpack.c.0.s8 %v948
    %v950 = vlaneseq
    %v951 = vshrl.u32 %v950, 7
    %v952 = vsub.s32 %v949, %v951
    %v953 = vrot.slane %v943, %v952
    %v955 = vunpack.c.l.s4 1983009808
    %v956 = vunpack.c.0.s8 %v955
    %v957 = vlaneseq
    %v958 = vshrl.u32 %v957, 7
    %v959 = vsub.s32 %v956, %v958
    %v960 = vrot.slane %v944, %v959
    %v962 = vunpack.c.l.s4 1983009808
    %v963 = vunpack.c.0.s8 %v962
    %v964 = vlaneseq
    %v965 = vshrl.u32 %v964, 7
    %v966 = vsub.s32 %v963, %v965
    %v967 = vrot.slane %v945, %v966
    %v969 = vunpack.c.l.s4 1983009808
    %v970 = vunpack.c.0.s8 %v969
    %v971 = vlaneseq
    %v972 = vshrl.u32 %v971, 7
    %v973 = vsub.s32 %v970, %v972
    %v974 = vrot.slane %v946, %v973
    %v975 = vcombine.low %v953, %v967
    %v976 = vcombine.high %v953, %v967
    %v977 = vcombine.low %v960, %v974
    %v978 = vcombine.low %v155, %v157
    %v979 = vcombine.high %v155, %v157
    %v980 = vcombine.low %v159, %v161
    %v981 = vcombine.high %v159, %v161
    %v983 = vunpack.c.l.s4 1983009808
    %v984 = vunpack.c.0.s8 %v983
    %v985 = vlaneseq
    %v986 = vshrl.u32 %v985, 7
    %v987 = vsub.s32 %v984, %v986
    %v988 = vrot.slane %v978, %v987
    %v990 = vunpack.c.l.s4 1983009808
    %v991 = vunpack.c.0.s8 %v990
    %v992 = vlaneseq
    %v993 = vshrl.u32 %v992, 7
    %v994 = vsub.s32 %v991, %v993
    %v995 = vrot.slane %v979, %v994
    %v997 = vunpack.c.l.s4 1983009808
    %v998 = vunpack.c.0.s8 %v997
    %v999 = vlaneseq
    %v1000 = vshrl.u32 %v999, 7
    %v1001 = vsub.s32 %v998, %v1000
    %v1002 = vrot.slane %v980, %v1001
    %v1004 = vunpack.c.l.s4 1983009808
    %v1005 = vunpack.c.0.s8 %v1004
    %v1006 = vlaneseq
    %v1007 = vshrl.u32 %v1006, 7
    %v1008 = vsub.s32 %v1005, %v1007
    %v1009 = vrot.slane %v981, %v1008
    %v1010 = vcombine.low %v988, %v1002
    %v1011 = vcombine.high %v988, %v1002
    %v1012 = vcombine.low %v995, %v1009
    %v1013 = vcombine.high %v995, %v1009
    %v1014 = vcombine.low %v156, %v158
    %v1015 = vcombine.high %v156, %v158
    %v1016 = vcombine.low %v160, %v162
    %v1017 = vcombine.high %v160, %v162
    %v1019 = vunpack.c.l.s4 1983009808
    %v1020 = vunpack.c.0.s8 %v1019
    %v1021 = vlaneseq
    %v1022 = vshrl.u32 %v1021, 7
    %v1023 = vsub.s32 %v1020, %v1022
    %v1024 = vrot.slane %v1014, %v1023
    %v1026 = vunpack.c.l.s4 1983009808
    %v1027 = vunpack.c.0.s8 %v1026
    %v1028 = vlaneseq
    %v1029 = vshrl.u32 %v1028, 7
    %v1030 = vsub.s32 %v1027, %v1029
    %v1031 = vrot.slane %v1015, %v1030
    %v1033 = vunpack.c.l.s4 1983009808
    %v1034 = vunpack.c.0.s8 %v1033
    %v1035 = vlaneseq
    %v1036 = vshrl.u32 %v1035, 7
    %v1037 = vsub.s32 %v1034, %v1036
    %v1038 = vrot.slane %v1016, %v1037
    %v1040 = vunpack.c.l.s4 1983009808
    %v1041 = vunpack.c.0.s8 %v1040
    %v1042 = vlaneseq
    %v1043 = vshrl.u32 %v1042, 7
    %v1044 = vsub.s32 %v1041, %v1043
    %v1045 = vrot.slane %v1017, %v1044
    %v1046 = vcombine.low %v1024, %v1038
    %v1047 = vcombine.high %v1024, %v1038
    %v1048 = vcombine.low %v1031, %v1045
    %v1049 = vcombine.low %v163, %v165
    %v1050 = vcombine.high %v163, %v165
    %v1051 = vcombine.low %v167, %v169
    %v1052 = vcombine.high %v167, %v169
    %v1054 = vunpack.c.l.s4 1983009808
    %v1055 = vunpack.c.0.s8 %v1054
    %v1056 = vlaneseq
    %v1057 = vshrl.u32 %v1056, 7
    %v1058 = vsub.s32 %v1055, %v1057
    %v1059 = vrot.slane %v1049, %v1058
    %v1061 = vunpack.c.l.s4 1983009808
    %v1062 = vunpack.c.0.s8 %v1061
    %v1063 = vlaneseq
    %v1064 = vshrl.u32 %v1063, 7
    %v1065 = vsub.s32 %v1062, %v1064
    %v1066 = vrot.slane %v1050, %v1065
    %v1068 = vunpack.c.l.s4 1983009808
    %v1069 = vunpack.c.0.s8 %v1068
    %v1070 = vlaneseq
    %v1071 = vshrl.u32 %v1070, 7
    %v1072 = vsub.s32 %v1069, %v1071
    %v1073 = vrot.slane %v1051, %v1072
    %v1075 = vunpack.c.l.s4 1983009808
    %v1076 = vunpack.c.0.s8 %v1075
    %v1077 = vlaneseq
    %v1078 = vshrl.u32 %v1077, 7
    %v1079 = vsub.s32 %v1076, %v1078
    %v1080 = vrot.slane %v1052, %v1079
    %v1081 = vcombine.low %v1059, %v1073
    %v1082 = vcombine.high %v1059, %v1073
    %v1083 = vcombine.low %v1066, %v1080
    %v1084 = vcombine.high %v1066, %v1080
    %v1085 = vcombine.low %v164, %v166
    %v1086 = vcombine.high %v164, %v166
    %v1087 = vcombine.low %v168, %v170
    %v1088 = vcombine.high %v168, %v170
    %v1090 = vunpack.c.l.s4 1983009808
    %v1091 = vunpack.c.0.s8 %v1090
    %v1092 = vlaneseq
    %v1093 = vshrl.u32 %v1092, 7
    %v1094 = vsub.s32 %v1091, %v1093
    %v1095 = vrot.slane %v1085, %v1094
    %v1097 = vunpack.c.l.s4 1983009808
    %v1098 = vunpack.c.0.s8 %v1097
    %v1099 = vlaneseq
    %v1100 = vshrl.u32 %v1099, 7
    %v1101 = vsub.s32 %v1098, %v1100
    %v1102 = vrot.slane %v1086, %v1101
    %v1104 = vunpack.c.l.s4 1983009808
    %v1105 = vunpack.c.0.s8 %v1104
    %v1106 = vlaneseq
    %v1107 = vshrl.u32 %v1106, 7
    %v1108 = vsub.s32 %v1105, %v1107
    %v1109 = vrot.slane %v1087, %v1108
    %v1111 = vunpack.c.l.s4 1983009808
    %v1112 = vunpack.c.0.s8 %v1111
    %v1113 = vlaneseq
    %v1114 = vshrl.u32 %v1113, 7
    %v1115 = vsub.s32 %v1112, %v1114
    %v1116 = vrot.slane %v1088, %v1115
    %v1117 = vcombine.low %v1095, %v1109
    %v1118 = vcombine.high %v1095, %v1109
    %v1119 = vcombine.low %v1102, %v1116
    %v1120 = vcombine.low %v171, %v173
    %v1121 = vcombine.high %v171, %v173
    %v1122 = vcombine.low %v175, %v177
    %v1123 = vcombine.high %v175, %v177
    %v1125 = vunpack.c.l.s4 1983009808
    %v1126 = vunpack.c.0.s8 %v1125
    %v1127 = vlaneseq
    %v1128 = vshrl.u32 %v1127, 7
    %v1129 = vsub.s32 %v1126, %v1128
    %v1130 = vrot.slane %v1120, %v1129
    %v1132 = vunpack.c.l.s4 1983009808
    %v1133 = vunpack.c.0.s8 %v1132
    %v1134 = vlaneseq
    %v1135 = vshrl.u32 %v1134, 7
    %v1136 = vsub.s32 %v1133, %v1135
    %v1137 = vrot.slane %v1121, %v1136
    %v1139 = vunpack.c.l.s4 1983009808
    %v1140 = vunpack.c.0.s8 %v1139
    %v1141 = vlaneseq
    %v1142 = vshrl.u32 %v1141, 7
    %v1143 = vsub.s32 %v1140, %v1142
    %v1144 = vrot.slane %v1122, %v1143
    %v1146 = vunpack.c.l.s4 1983009808
    %v1147 = vunpack.c.0.s8 %v1146
    %v1148 = vlaneseq
    %v1149 = vshrl.u32 %v1148, 7
    %v1150 = vsub.s32 %v1147, %v1149
    %v1151 = vrot.slane %v1123, %v1150
    %v1152 = vcombine.low %v1130, %v1144
    %v1153 = vcombine.high %v1130, %v1144
    %v1154 = vcombine.low %v1137, %v1151
    %v1155 = vcombine.high %v1137, %v1151
    %v1156 = vcombine.low %v172, %v174
    %v1157 = vcombine.high %v172, %v174
    %v1158 = vcombine.low %v176, %v178
    %v1159 = vcombine.high %v176, %v178
    %v1161 = vunpack.c.l.s4 1983009808
    %v1162 = vunpack.c.0.s8 %v1161
    %v1163 = vlaneseq
    %v1164 = vshrl.u32 %v1163, 7
    %v1165 = vsub.s32 %v1162, %v1164
    %v1166 = vrot.slane %v1156, %v1165
    %v1168 = vunpack.c.l.s4 1983009808
    %v1169 = vunpack.c.0.s8 %v1168
    %v1170 = vlaneseq
    %v1171 = vshrl.u32 %v1170, 7
    %v1172 = vsub.s32 %v1169, %v1171
    %v1173 = vrot.slane %v1157, %v1172
    %v1175 = vunpack.c.l.s4 1983009808
    %v1176 = vunpack.c.0.s8 %v1175
    %v1177 = vlaneseq
    %v1178 = vshrl.u32 %v1177, 7
    %v1179 = vsub.s32 %v1176, %v1178
    %v1180 = vrot.slane %v1158, %v1179
    %v1182 = vunpack.c.l.s4 1983009808
    %v1183 = vunpack.c.0.s8 %v1182
    %v1184 = vlaneseq
    %v1185 = vshrl.u32 %v1184, 7
    %v1186 = vsub.s32 %v1183, %v1185
    %v1187 = vrot.slane %v1159, %v1186
    %v1188 = vcombine.low %v1166, %v1180
    %v1189 = vcombine.high %v1166, %v1180
    %v1190 = vcombine.low %v1173, %v1187
    %v1191 = vcombine.low %v179, %v181
    %v1192 = vcombine.high %v179, %v181
    %v1193 = vcombine.low %v183, %v185
    %v1194 = vcombine.high %v183, %v185
    %v1196 = vunpack.c.l.s4 1983009808
    %v1197 = vunpack.c.0.s8 %v1196
    %v1198 = vlaneseq
    %v1199 = vshrl.u32 %v1198, 7
    %v1200 = vsub.s32 %v1197, %v1199
    %v1201 = vrot.slane %v1191, %v1200
    %v1203 = vunpack.c.l.s4 1983009808
    %v1204 = vunpack.c.0.s8 %v1203
    %v1205 = vlaneseq
    %v1206 = vshrl.u32 %v1205, 7
    %v1207 = vsub.s32 %v1204, %v1206
    %v1208 = vrot.slane %v1192, %v1207
    %v1210 = vunpack.c.l.s4 1983009808
    %v1211 = vunpack.c.0.s8 %v1210
    %v1212 = vlaneseq
    %v1213 = vshrl.u32 %v1212, 7
    %v1214 = vsub.s32 %v1211, %v1213
    %v1215 = vrot.slane %v1193, %v1214
    %v1217 = vunpack.c.l.s4 1983009808
    %v1218 = vunpack.c.0.s8 %v1217
    %v1219 = vlaneseq
    %v1220 = vshrl.u32 %v1219, 7
    %v1221 = vsub.s32 %v1218, %v1220
    %v1222 = vrot.slane %v1194, %v1221
    %v1223 = vcombine.low %v1201, %v1215
    %v1224 = vcombine.high %v1201, %v1215
    %v1225 = vcombine.low %v1208, %v1222
    %v1226 = vcombine.high %v1208, %v1222
    %v1227 = vcombine.low %v180, %v182
    %v1228 = vcombine.high %v180, %v182
    %v1229 = vcombine.low %v184, %v186
    %v1230 = vcombine.high %v184, %v186
    %v1232 = vunpack.c.l.s4 1983009808
    %v1233 = vunpack.c.0.s8 %v1232
    %v1234 = vlaneseq
    %v1235 = vshrl.u32 %v1234, 7
    %v1236 = vsub.s32 %v1233, %v1235
    %v1237 = vrot.slane %v1227, %v1236
    %v1239 = vunpack.c.l.s4 1983009808
    %v1240 = vunpack.c.0.s8 %v1239
    %v1241 = vlaneseq
    %v1242 = vshrl.u32 %v1241, 7
    %v1243 = vsub.s32 %v1240, %v1242
    %v1244 = vrot.slane %v1228, %v1243
    %v1246 = vunpack.c.l.s4 1983009808
    %v1247 = vunpack.c.0.s8 %v1246
    %v1248 = vlaneseq
    %v1249 = vshrl.u32 %v1248, 7
    %v1250 = vsub.s32 %v1247, %v1249
    %v1251 = vrot.slane %v1229, %v1250
    %v1253 = vunpack.c.l.s4 1983009808
    %v1254 = vunpack.c.0.s8 %v1253
    %v1255 = vlaneseq
    %v1256 = vshrl.u32 %v1255, 7
    %v1257 = vsub.s32 %v1254, %v1256
    %v1258 = vrot.slane %v1230, %v1257
    %v1259 = vcombine.low %v1237, %v1251
    %v1260 = vcombine.high %v1237, %v1251
    %v1261 = vcombine.low %v1244, %v1258
    %v1262 = vcombine.low %v187, %v189
    %v1263 = vcombine.high %v187, %v189
    %v1264 = vcombine.low %v191, %v193
    %v1265 = vcombine.high %v191, %v193
    %v1267 = vunpack.c.l.s4 1983009808
    %v1268 = vunpack.c.0.s8 %v1267
    %v1269 = vlaneseq
    %v1270 = vshrl.u32 %v1269, 7
    %v1271 = vsub.s32 %v1268, %v1270
    %v1272 = vrot.slane %v1262, %v1271
    %v1274 = vunpack.c.l.s4 1983009808
    %v1275 = vunpack.c.0.s8 %v1274
    %v1276 = vlaneseq
    %v1277 = vshrl.u32 %v1276, 7
    %v1278 = vsub.s32 %v1275, %v1277
    %v1279 = vrot.slane %v1263, %v1278
    %v1281 = vunpack.c.l.s4 1983009808
    %v1282 = vunpack.c.0.s8 %v1281
    %v1283 = vlaneseq
    %v1284 = vshrl.u32 %v1283, 7
    %v1285 = vsub.s32 %v1282, %v1284
    %v1286 = vrot.slane %v1264, %v1285
    %v1288 = vunpack.c.l.s4 1983009808
    %v1289 = vunpack.c.0.s8 %v1288
    %v1290 = vlaneseq
    %v1291 = vshrl.u32 %v1290, 7
    %v1292 = vsub.s32 %v1289, %v1291
    %v1293 = vrot.slane %v1265, %v1292
    %v1294 = vcombine.low %v1272, %v1286
    %v1295 = vcombine.high %v1272, %v1286
    %v1296 = vcombine.low %v1279, %v1293
    %v1297 = vcombine.high %v1279, %v1293
    %v1298 = vcombine.low %v188, %v190
    %v1299 = vcombine.high %v188, %v190
    %v1300 = vcombine.low %v192, %v194
    %v1301 = vcombine.high %v192, %v194
    %v1303 = vunpack.c.l.s4 1983009808
    %v1304 = vunpack.c.0.s8 %v1303
    %v1305 = vlaneseq
    %v1306 = vshrl.u32 %v1305, 7
    %v1307 = vsub.s32 %v1304, %v1306
    %v1308 = vrot.slane %v1298, %v1307
    %v1310 = vunpack.c.l.s4 1983009808
    %v1311 = vunpack.c.0.s8 %v1310
    %v1312 = vlaneseq
    %v1313 = vshrl.u32 %v1312, 7
    %v1314 = vsub.s32 %v1311, %v1313
    %v1315 = vrot.slane %v1299, %v1314
    %v1317 = vunpack.c.l.s4 1983009808
    %v1318 = vunpack.c.0.s8 %v1317
    %v1319 = vlaneseq
    %v1320 = vshrl.u32 %v1319, 7
    %v1321 = vsub.s32 %v1318, %v1320
    %v1322 = vrot.slane %v1300, %v1321
    %v1324 = vunpack.c.l.s4 1983009808
    %v1325 = vunpack.c.0.s8 %v1324
    %v1326 = vlaneseq
    %v1327 = vshrl.u32 %v1326, 7
    %v1328 = vsub.s32 %v1325, %v1327
    %v1329 = vrot.slane %v1301, %v1328
    %v1330 = vcombine.low %v1308, %v1322
    %v1331 = vcombine.high %v1308, %v1322
    %v1332 = vcombine.low %v1315, %v1329
    %v1333 = vcombine.low %v195, %v197
    %v1334 = vcombine.high %v195, %v197
    %v1335 = vcombine.low %v199, %v201
    %v1336 = vcombine.high %v199, %v201
    %v1338 = vunpack.c.l.s4 1983009808
    %v1339 = vunpack.c.0.s8 %v1338
    %v1340 = vlaneseq
    %v1341 = vshrl.u32 %v1340, 7
    %v1342 = vsub.s32 %v1339, %v1341
    %v1343 = vrot.slane %v1333, %v1342
    %v1345 = vunpack.c.l.s4 1983009808
    %v1346 = vunpack.c.0.s8 %v1345
    %v1347 = vlaneseq
    %v1348 = vshrl.u32 %v1347, 7
    %v1349 = vsub.s32 %v1346, %v1348
    %v1350 = vrot.slane %v1334, %v1349
    %v1352 = vunpack.c.l.s4 1983009808
    %v1353 = vunpack.c.0.s8 %v1352
    %v1354 = vlaneseq
    %v1355 = vshrl.u32 %v1354, 7
    %v1356 = vsub.s32 %v1353, %v1355
    %v1357 = vrot.slane %v1335, %v1356
    %v1359 = vunpack.c.l.s4 1983009808
    %v1360 = vunpack.c.0.s8 %v1359
    %v1361 = vlaneseq
    %v1362 = vshrl.u32 %v1361, 7
    %v1363 = vsub.s32 %v1360, %v1362
    %v1364 = vrot.slane %v1336, %v1363
    %v1365 = vcombine.low %v1343, %v1357
    %v1366 = vcombine.high %v1343, %v1357
    %v1367 = vcombine.low %v1350, %v1364
    %v1368 = vcombine.high %v1350, %v1364
    %v1369 = vcombine.low %v196, %v198
    %v1370 = vcombine.high %v196, %v198
    %v1371 = vcombine.low %v200, %v202
    %v1372 = vcombine.high %v200, %v202
    %v1374 = vunpack.c.l.s4 1983009808
    %v1375 = vunpack.c.0.s8 %v1374
    %v1376 = vlaneseq
    %v1377 = vshrl.u32 %v1376, 7
    %v1378 = vsub.s32 %v1375, %v1377
    %v1379 = vrot.slane %v1369, %v1378
    %v1381 = vunpack.c.l.s4 1983009808
    %v1382 = vunpack.c.0.s8 %v1381
    %v1383 = vlaneseq
    %v1384 = vshrl.u32 %v1383, 7
    %v1385 = vsub.s32 %v1382, %v1384
    %v1386 = vrot.slane %v1370, %v1385
    %v1388 = vunpack.c.l.s4 1983009808
    %v1389 = vunpack.c.0.s8 %v1388
    %v1390 = vlaneseq
    %v1391 = vshrl.u32 %v1390, 7
    %v1392 = vsub.s32 %v1389, %v1391
    %v1393 = vrot.slane %v1371, %v1392
    %v1395 = vunpack.c.l.s4 1983009808
    %v1396 = vunpack.c.0.s8 %v1395
    %v1397 = vlaneseq
    %v1398 = vshrl.u32 %v1397, 7
    %v1399 = vsub.s32 %v1396, %v1398
    %v1400 = vrot.slane %v1372, %v1399
    %v1401 = vcombine.low %v1379, %v1393
    %v1402 = vcombine.high %v1379, %v1393
    %v1403 = vcombine.low %v1386, %v1400
    %v1404 = vcombine.low %v203, %v205
    %v1405 = vcombine.high %v203, %v205
    %v1406 = vcombine.low %v207, %v209
    %v1407 = vcombine.high %v207, %v209
    %v1409 = vunpack.c.l.s4 1983009808
    %v1410 = vunpack.c.0.s8 %v1409
    %v1411 = vlaneseq
    %v1412 = vshrl.u32 %v1411, 7
    %v1413 = vsub.s32 %v1410, %v1412
    %v1414 = vrot.slane %v1404, %v1413
    %v1416 = vunpack.c.l.s4 1983009808
    %v1417 = vunpack.c.0.s8 %v1416
    %v1418 = vlaneseq
    %v1419 = vshrl.u32 %v1418, 7
    %v1420 = vsub.s32 %v1417, %v1419
    %v1421 = vrot.slane %v1405, %v1420
    %v1423 = vunpack.c.l.s4 1983009808
    %v1424 = vunpack.c.0.s8 %v1423
    %v1425 = vlaneseq
    %v1426 = vshrl.u32 %v1425, 7
    %v1427 = vsub.s32 %v1424, %v1426
    %v1428 = vrot.slane %v1406, %v1427
    %v1430 = vunpack.c.l.s4 1983009808
    %v1431 = vunpack.c.0.s8 %v1430
    %v1432 = vlaneseq
    %v1433 = vshrl.u32 %v1432, 7
    %v1434 = vsub.s32 %v1431, %v1433
    %v1435 = vrot.slane %v1407, %v1434
    %v1436 = vcombine.low %v1414, %v1428
    %v1437 = vcombine.high %v1414, %v1428
    %v1438 = vcombine.low %v1421, %v1435
    %v1439 = vcombine.high %v1421, %v1435
    %v1440 = vcombine.low %v204, %v206
    %v1441 = vcombine.high %v204, %v206
    %v1442 = vcombine.low %v208, %v210
    %v1443 = vcombine.high %v208, %v210
    %v1445 = vunpack.c.l.s4 1983009808
    %v1446 = vunpack.c.0.s8 %v1445
    %v1447 = vlaneseq
    %v1448 = vshrl.u32 %v1447, 7
    %v1449 = vsub.s32 %v1446, %v1448
    %v1450 = vrot.slane %v1440, %v1449
    %v1452 = vunpack.c.l.s4 1983009808
    %v1453 = vunpack.c.0.s8 %v1452
    %v1454 = vlaneseq
    %v1455 = vshrl.u32 %v1454, 7
    %v1456 = vsub.s32 %v1453, %v1455
    %v1457 = vrot.slane %v1441, %v1456
    %v1459 = vunpack.c.l.s4 1983009808
    %v1460 = vunpack.c.0.s8 %v1459
    %v1461 = vlaneseq
    %v1462 = vshrl.u32 %v1461, 7
    %v1463 = vsub.s32 %v1460, %v1462
    %v1464 = vrot.slane %v1442, %v1463
    %v1466 = vunpack.c.l.s4 1983009808
    %v1467 = vunpack.c.0.s8 %v1466
    %v1468 = vlaneseq
    %v1469 = vshrl.u32 %v1468, 7
    %v1470 = vsub.s32 %v1467, %v1469
    %v1471 = vrot.slane %v1443, %v1470
    %v1472 = vcombine.low %v1450, %v1464
    %v1473 = vcombine.high %v1450, %v1464
    %v1474 = vcombine.low %v1457, %v1471
    %v1587 = vpack.c.bf16 %v442, %v371
    %v1588 = vpack.c.bf16 %v443, %v372
    %v1589 = vpack.c.bf16 %v444, %v373
    %v1590 = vpack.c.bf16 %v445, %v374
    %v1591 = vpack.c.bf16 %v478, %v407
    %v1592 = vpack.c.bf16 %v479, %v408
    %v1593 = vpack.c.bf16 %v480, %v409
    %v1594 = vpack.c.bf16 %v584, %v513
    %v1595 = vpack.c.bf16 %v585, %v514
    %v1596 = vpack.c.bf16 %v586, %v515
    %v1597 = vpack.c.bf16 %v587, %v516
    %v1598 = vpack.c.bf16 %v620, %v549
    %v1599 = vpack.c.bf16 %v621, %v550
    %v1600 = vpack.c.bf16 %v622, %v551
    %v1601 = vpack.c.bf16 %v726, %v655
    %v1602 = vpack.c.bf16 %v727, %v656
    %v1603 = vpack.c.bf16 %v728, %v657
    %v1604 = vpack.c.bf16 %v729, %v658
    %v1605 = vpack.c.bf16 %v762, %v691
    %v1606 = vpack.c.bf16 %v763, %v692
    %v1607 = vpack.c.bf16 %v764, %v693
    %v1608 = vpack.c.bf16 %v868, %v797
    %v1609 = vpack.c.bf16 %v869, %v798
    %v1610 = vpack.c.bf16 %v870, %v799
    %v1611 = vpack.c.bf16 %v871, %v800
    %v1612 = vpack.c.bf16 %v904, %v833
    %v1613 = vpack.c.bf16 %v905, %v834
    %v1614 = vpack.c.bf16 %v906, %v835
    %v1615 = vpack.c.bf16 %v1010, %v939
    %v1616 = vpack.c.bf16 %v1011, %v940
    %v1617 = vpack.c.bf16 %v1012, %v941
    %v1618 = vpack.c.bf16 %v1013, %v942
    %v1619 = vpack.c.bf16 %v1046, %v975
    %v1620 = vpack.c.bf16 %v1047, %v976
    %v1621 = vpack.c.bf16 %v1048, %v977
    %v1622 = vpack.c.bf16 %v1152, %v1081
    %v1623 = vpack.c.bf16 %v1153, %v1082
    %v1624 = vpack.c.bf16 %v1154, %v1083
    %v1625 = vpack.c.bf16 %v1155, %v1084
    %v1626 = vpack.c.bf16 %v1188, %v1117
    %v1627 = vpack.c.bf16 %v1189, %v1118
    %v1628 = vpack.c.bf16 %v1190, %v1119
    %v1629 = vpack.c.bf16 %v1294, %v1223
    %v1630 = vpack.c.bf16 %v1295, %v1224
    %v1631 = vpack.c.bf16 %v1296, %v1225
    %v1632 = vpack.c.bf16 %v1297, %v1226
    %v1633 = vpack.c.bf16 %v1330, %v1259
    %v1634 = vpack.c.bf16 %v1331, %v1260
    %v1635 = vpack.c.bf16 %v1332, %v1261
    %v1636 = vpack.c.bf16 %v1436, %v1365
    %v1637 = vpack.c.bf16 %v1437, %v1366
    %v1638 = vpack.c.bf16 %v1438, %v1367
    %v1639 = vpack.c.bf16 %v1439, %v1368
    %v1640 = vpack.c.bf16 %v1472, %v1401
    %v1641 = vpack.c.bf16 %v1473, %v1402
    %v1642 = vpack.c.bf16 %v1474, %v1403
    %v1643 = vld [vmem:[#allocation5] sm:$0xff]
    %v1644 = vld [vmem:[#allocation5 + $0x8] sm:$0xff]
    %v1645 = vld [vmem:[#allocation5 + $0x10] sm:$0xff]
    %v1646 = vld [vmem:[#allocation5 + $0x18] sm:$0xff]
    %v1647 = vld [vmem:[#allocation5 + $0x20] sm:$0xff]
    %v1648 = vld [vmem:[#allocation5 + $0x28] sm:$0xff]
    %v1649 = vld [vmem:[#allocation5 + $0x30] sm:$0xff]
    %v1650 = vld [vmem:[#allocation5 + $0x38] sm:$0xff]
    %v1651 = vld [vmem:[#allocation5 + $0x40] sm:$0xff]
    %v1652 = vld [vmem:[#allocation5 + $0x48] sm:$0xff]
    %v1653 = vld [vmem:[#allocation5 + $0x50] sm:$0xff]
    %v1654 = vld [vmem:[#allocation5 + $0x58] sm:$0xff]
    %v1655 = vld [vmem:[#allocation5 + $0x60] sm:$0xff]
    %v1656 = vld [vmem:[#allocation5 + $0x68] sm:$0xff]
    %v1657 = vld [vmem:[#allocation5 + $0x70] sm:$0xff]
    %v1658 = vld [vmem:[#allocation5 + $0x78] sm:$0xff]
    %v1659 = vld [vmem:[#allocation5 + $0x80] sm:$0xff]
    %v1660 = vld [vmem:[#allocation5 + $0x88] sm:$0xff]
    %v1661 = vld [vmem:[#allocation5 + $0x90] sm:$0xff]
    %v1662 = vld [vmem:[#allocation5 + $0x98] sm:$0xff]
    %v1663 = vld [vmem:[#allocation5 + $0xa0] sm:$0xff]
    %v1664 = vld [vmem:[#allocation5 + $0xa8] sm:$0xff]
    %v1665 = vld [vmem:[#allocation5 + $0xb0] sm:$0xff]
    %v1666 = vld [vmem:[#allocation5 + $0xb8] sm:$0xff]
    %v1667 = vld [vmem:[#allocation5 + $0xc0] sm:$0xff]
    %v1668 = vld [vmem:[#allocation5 + $0xc8] sm:$0xff]
    %v1669 = vld [vmem:[#allocation5 + $0xd0] sm:$0xff]
    %v1670 = vld [vmem:[#allocation5 + $0xd8] sm:$0xff]
    %v1671 = vld [vmem:[#allocation5 + $0xe0] sm:$0xff]
    %v1672 = vld [vmem:[#allocation5 + $0xe8] sm:$0xff]
    %v1673 = vld [vmem:[#allocation5 + $0xf0] sm:$0xff]
    %v1674 = vld [vmem:[#allocation5 + $0xf8] sm:$0xff]
    %v1675 = vld [vmem:[#allocation5 + $0x100] sm:$0xff]
    %v1676 = vld [vmem:[#allocation5 + $0x108] sm:$0xff]
    %v1677 = vld [vmem:[#allocation5 + $0x110] sm:$0xff]
    %v1678 = vld [vmem:[#allocation5 + $0x118] sm:$0xff]
    %v1679 = vld [vmem:[#allocation5 + $0x120] sm:$0xff]
    %v1680 = vld [vmem:[#allocation5 + $0x128] sm:$0xff]
    %v1681 = vld [vmem:[#allocation5 + $0x130] sm:$0xff]
    %v1682 = vld [vmem:[#allocation5 + $0x138] sm:$0xff]
    %v1683 = vld [vmem:[#allocation5 + $0x140] sm:$0xff]
    %v1684 = vld [vmem:[#allocation5 + $0x148] sm:$0xff]
    %v1685 = vld [vmem:[#allocation5 + $0x150] sm:$0xff]
    %v1686 = vld [vmem:[#allocation5 + $0x158] sm:$0xff]
    %v1687 = vld [vmem:[#allocation5 + $0x160] sm:$0xff]
    %v1688 = vld [vmem:[#allocation5 + $0x168] sm:$0xff]
    %v1689 = vld [vmem:[#allocation5 + $0x170] sm:$0xff]
    %v1690 = vld [vmem:[#allocation5 + $0x178] sm:$0xff]
    %v1691 = vld [vmem:[#allocation5 + $0x180] sm:$0xff]
    %v1692 = vld [vmem:[#allocation5 + $0x188] sm:$0xff]
    %v1693 = vld [vmem:[#allocation5 + $0x190] sm:$0xff]
    %v1694 = vld [vmem:[#allocation5 + $0x198] sm:$0xff]
    %v1695 = vld [vmem:[#allocation5 + $0x1a0] sm:$0xff]
    %v1696 = vld [vmem:[#allocation5 + $0x1a8] sm:$0xff]
    %v1697 = vld [vmem:[#allocation5 + $0x1b0] sm:$0xff]
    %v1698 = vld [vmem:[#allocation5 + $0x1b8] sm:$0xff]
    %v1699 = vld [vmem:[#allocation5 + $0x1c0] sm:$0xff]
    %v1700 = vld [vmem:[#allocation5 + $0x1c8] sm:$0xff]
    %v1701 = vld [vmem:[#allocation5 + $0x1d0] sm:$0xff]
    %v1702 = vld [vmem:[#allocation5 + $0x1d8] sm:$0xff]
    %v1703 = vld [vmem:[#allocation5 + $0x1e0] sm:$0xff]
    %v1704 = vld [vmem:[#allocation5 + $0x1e8] sm:$0xff]
    %v1705 = vld [vmem:[#allocation5 + $0x1f0] sm:$0xff]
    %v1706 = vld [vmem:[#allocation5 + $0x1f8] sm:$0xff]
    %v1707 = vld [vmem:[#allocation5 + $0x200] sm:$0xff]
    %v1708 = vld [vmem:[#allocation5 + $0x208] sm:$0xff]
    %v1709 = vld [vmem:[#allocation5 + $0x210] sm:$0xff]
    %v1710 = vld [vmem:[#allocation5 + $0x218] sm:$0xff]
    %v1711 = vld [vmem:[#allocation5 + $0x220] sm:$0xff]
    %v1712 = vld [vmem:[#allocation5 + $0x228] sm:$0xff]
    %v1713 = vld [vmem:[#allocation5 + $0x230] sm:$0xff]
    %v1714 = vld [vmem:[#allocation5 + $0x238] sm:$0xff]
    %v1715 = vld [vmem:[#allocation5 + $0x240] sm:$0xff]
    %v1716 = vld [vmem:[#allocation5 + $0x248] sm:$0xff]
    %v1717 = vld [vmem:[#allocation5 + $0x250] sm:$0xff]
    %v1718 = vld [vmem:[#allocation5 + $0x258] sm:$0xff]
    %v1719 = vld [vmem:[#allocation5 + $0x260] sm:$0xff]
    %v1720 = vld [vmem:[#allocation5 + $0x268] sm:$0xff]
    %v1721 = vld [vmem:[#allocation5 + $0x270] sm:$0xff]
    %v1722 = vld [vmem:[#allocation5 + $0x278] sm:$0xff]
    %v1723 = vld [vmem:[#allocation5 + $0x280] sm:$0xff]
    %v1724 = vld [vmem:[#allocation5 + $0x288] sm:$0xff]
    %v1725 = vld [vmem:[#allocation5 + $0x290] sm:$0xff]
    %v1726 = vld [vmem:[#allocation5 + $0x298] sm:$0xff]
    %v1727 = vld [vmem:[#allocation5 + $0x2a0] sm:$0xff]
    %v1728 = vld [vmem:[#allocation5 + $0x2a8] sm:$0xff]
    %v1729 = vld [vmem:[#allocation5 + $0x2b0] sm:$0xff]
    %v1730 = vld [vmem:[#allocation5 + $0x2b8] sm:$0xff]
    %v1731 = vld [vmem:[#allocation5 + $0x2c0] sm:$0xff]
    %v1732 = vld [vmem:[#allocation5 + $0x2c8] sm:$0xff]
    %v1733 = vld [vmem:[#allocation5 + $0x2d0] sm:$0xff]
    %v1734 = vld [vmem:[#allocation5 + $0x2d8] sm:$0xff]
    %v1735 = vld [vmem:[#allocation5 + $0x2e0] sm:$0xff]
    %v1736 = vld [vmem:[#allocation5 + $0x2e8] sm:$0xff]
    %v1737 = vld [vmem:[#allocation5 + $0x2f0] sm:$0xff]
    %v1738 = vld [vmem:[#allocation5 + $0x2f8] sm:$0xff]
    %v1739 = vld [vmem:[#allocation5 + $0x300] sm:$0xff]
    %v1740 = vld [vmem:[#allocation5 + $0x308] sm:$0xff]
    %v1741 = vld [vmem:[%s2] sm:$0x3]
    %v1743 = vlaneseq
    %v1744 = vshrl.u32 %v1743, 7
    %v1745 = vsub.s32 0, %v1744
    %v1746 = vrot.slane %v1741, %v1745
    %v1747 = vlaneseq
    %v1748 = vshrl.u32 %v1747, 7
    %v1749 = vsub.s32 1, %v1748
    %v1750 = vrot.slane %v1741, %v1749
    %v1851 = vunpack.c.l.b16 %v1643
    %v1852 = vunpack.c.h.b16 %v1643
    %v1853 = vunpack.c.l.b16 %v1644
    %v1854 = vunpack.c.h.b16 %v1644
    %v1855 = vunpack.c.l.b16 %v1645
    %v1856 = vunpack.c.h.b16 %v1645
    %v1857 = vunpack.c.l.b16 %v1646
    %v1858 = vunpack.c.h.b16 %v1646
    %v1859 = vunpack.c.l.b16 %v1647
    %v1860 = vunpack.c.h.b16 %v1647
    %v1861 = vunpack.c.l.b16 %v1648
    %v1862 = vunpack.c.h.b16 %v1648
    %v1863 = vunpack.c.l.b16 %v1649
    %v1864 = vunpack.c.h.b16 %v1649
    %v1865 = vunpack.c.l.b16 %v1650
    %v1866 = vunpack.c.h.b16 %v1650
    %v1867 = vunpack.c.l.b16 %v1651
    %v1868 = vunpack.c.h.b16 %v1651
    %v1869 = vunpack.c.l.b16 %v1652
    %v1870 = vunpack.c.h.b16 %v1652
    %v1871 = vunpack.c.l.b16 %v1653
    %v1872 = vunpack.c.h.b16 %v1653
    %v1873 = vunpack.c.l.b16 %v1654
    %v1874 = vunpack.c.h.b16 %v1654
    %v1875 = vunpack.c.l.b16 %v1655
    %v1876 = vunpack.c.h.b16 %v1655
    %v1877 = vunpack.c.l.b16 %v1656
    %v1878 = vunpack.c.h.b16 %v1656
    %v1879 = vunpack.c.l.b16 %v1657
    %v1880 = vunpack.c.h.b16 %v1657
    %v1881 = vunpack.c.l.b16 %v1658
    %v1882 = vunpack.c.h.b16 %v1658
    %v1883 = vunpack.c.l.b16 %v1659
    %v1884 = vunpack.c.h.b16 %v1659
    %v1885 = vunpack.c.l.b16 %v1660
    %v1886 = vunpack.c.h.b16 %v1660
    %v1887 = vunpack.c.l.b16 %v1661
    %v1888 = vunpack.c.h.b16 %v1661
    %v1889 = vunpack.c.l.b16 %v1662
    %v1890 = vunpack.c.h.b16 %v1662
    %v1891 = vunpack.c.l.b16 %v1663
    %v1892 = vunpack.c.h.b16 %v1663
    %v1893 = vunpack.c.l.b16 %v1664
    %v1894 = vunpack.c.h.b16 %v1664
    %v1895 = vunpack.c.l.b16 %v1665
    %v1896 = vunpack.c.h.b16 %v1665
    %v1897 = vunpack.c.l.b16 %v1666
    %v1898 = vunpack.c.h.b16 %v1666
    %v1899 = vunpack.c.l.b16 %v1667
    %v1900 = vunpack.c.h.b16 %v1667
    %v1901 = vunpack.c.l.b16 %v1668
    %v1902 = vunpack.c.h.b16 %v1668
    %v1903 = vunpack.c.l.b16 %v1669
    %v1904 = vunpack.c.h.b16 %v1669
    %v1905 = vunpack.c.l.b16 %v1670
    %v1906 = vunpack.c.h.b16 %v1670
    %v1907 = vunpack.c.l.b16 %v1671
    %v1908 = vunpack.c.h.b16 %v1671
    %v1909 = vunpack.c.l.b16 %v1672
    %v1910 = vunpack.c.h.b16 %v1672
    %v1911 = vunpack.c.l.b16 %v1673
    %v1912 = vunpack.c.h.b16 %v1673
    %v1913 = vunpack.c.l.b16 %v1674
    %v1914 = vunpack.c.h.b16 %v1674
    %v1915 = vunpack.c.l.b16 %v1675
    %v1916 = vunpack.c.h.b16 %v1675
    %v1917 = vunpack.c.l.b16 %v1676
    %v1918 = vunpack.c.h.b16 %v1676
    %v1919 = vunpack.c.l.b16 %v1677
    %v1920 = vunpack.c.h.b16 %v1677
    %v1921 = vunpack.c.l.b16 %v1678
    %v1922 = vunpack.c.h.b16 %v1678
    %v1923 = vunpack.c.l.b16 %v1679
    %v1924 = vunpack.c.h.b16 %v1679
    %v1925 = vunpack.c.l.b16 %v1680
    %v1926 = vunpack.c.h.b16 %v1680
    %v1927 = vunpack.c.l.b16 %v1681
    %v1928 = vunpack.c.h.b16 %v1681
    %v1929 = vunpack.c.l.b16 %v1682
    %v1930 = vunpack.c.h.b16 %v1682
    %v1931 = vunpack.c.l.b16 %v1683
    %v1932 = vunpack.c.h.b16 %v1683
    %v1933 = vunpack.c.l.b16 %v1684
    %v1934 = vunpack.c.h.b16 %v1684
    %v1935 = vunpack.c.l.b16 %v1685
    %v1936 = vunpack.c.h.b16 %v1685
    %v1937 = vunpack.c.l.b16 %v1686
    %v1938 = vunpack.c.h.b16 %v1686
    %v1939 = vunpack.c.l.b16 %v1687
    %v1940 = vunpack.c.h.b16 %v1687
    %v1941 = vunpack.c.l.b16 %v1688
    %v1942 = vunpack.c.h.b16 %v1688
    %v1943 = vunpack.c.l.b16 %v1689
    %v1944 = vunpack.c.h.b16 %v1689
    %v1945 = vunpack.c.l.b16 %v1690
    %v1946 = vunpack.c.h.b16 %v1690
    %v1947 = vunpack.c.l.b16 %v1691
    %v1948 = vunpack.c.h.b16 %v1691
    %v1949 = vunpack.c.l.b16 %v1692
    %v1950 = vunpack.c.h.b16 %v1692
    %v1951 = vunpack.c.l.b16 %v1693
    %v1952 = vunpack.c.h.b16 %v1693
    %v1953 = vunpack.c.l.b16 %v1694
    %v1954 = vunpack.c.h.b16 %v1694
    %v1955 = vunpack.c.l.b16 %v1695
    %v1956 = vunpack.c.h.b16 %v1695
    %v1957 = vunpack.c.l.b16 %v1696
    %v1958 = vunpack.c.h.b16 %v1696
    %v1959 = vunpack.c.l.b16 %v1697
    %v1960 = vunpack.c.h.b16 %v1697
    %v1961 = vunpack.c.l.b16 %v1698
    %v1962 = vunpack.c.h.b16 %v1698
    %v1963 = vunpack.c.l.b16 %v1699
    %v1964 = vunpack.c.h.b16 %v1699
    %v1965 = vunpack.c.l.b16 %v1700
    %v1966 = vunpack.c.h.b16 %v1700
    %v1967 = vunpack.c.l.b16 %v1701
    %v1968 = vunpack.c.h.b16 %v1701
    %v1969 = vunpack.c.l.b16 %v1702
    %v1970 = vunpack.c.h.b16 %v1702
    %v1971 = vunpack.c.l.b16 %v1703
    %v1972 = vunpack.c.h.b16 %v1703
    %v1973 = vunpack.c.l.b16 %v1704
    %v1974 = vunpack.c.h.b16 %v1704
    %v1975 = vunpack.c.l.b16 %v1705
    %v1976 = vunpack.c.h.b16 %v1705
    %v1977 = vunpack.c.l.b16 %v1706
    %v1978 = vunpack.c.h.b16 %v1706
    %v1979 = vunpack.c.l.b16 %v1707
    %v1980 = vunpack.c.h.b16 %v1707
    %v1981 = vunpack.c.l.b16 %v1708
    %v1982 = vunpack.c.h.b16 %v1708
    %v1983 = vunpack.c.l.b16 %v1709
    %v1984 = vunpack.c.h.b16 %v1709
    %v1985 = vunpack.c.l.b16 %v1710
    %v1986 = vunpack.c.h.b16 %v1710
    %v1987 = vunpack.c.l.b16 %v1711
    %v1988 = vunpack.c.h.b16 %v1711
    %v1989 = vunpack.c.l.b16 %v1712
    %v1990 = vunpack.c.h.b16 %v1712
    %v1991 = vunpack.c.l.b16 %v1713
    %v1992 = vunpack.c.h.b16 %v1713
    %v1993 = vunpack.c.l.b16 %v1714
    %v1994 = vunpack.c.h.b16 %v1714
    %v1995 = vunpack.c.l.b16 %v1715
    %v1996 = vunpack.c.h.b16 %v1715
    %v1997 = vunpack.c.l.b16 %v1716
    %v1998 = vunpack.c.h.b16 %v1716
    %v1999 = vunpack.c.l.b16 %v1717
    %v2000 = vunpack.c.h.b16 %v1717
    %v2001 = vunpack.c.l.b16 %v1718
    %v2002 = vunpack.c.h.b16 %v1718
    %v2003 = vunpack.c.l.b16 %v1719
    %v2004 = vunpack.c.h.b16 %v1719
    %v2005 = vunpack.c.l.b16 %v1720
    %v2006 = vunpack.c.h.b16 %v1720
    %v2007 = vunpack.c.l.b16 %v1721
    %v2008 = vunpack.c.h.b16 %v1721
    %v2009 = vunpack.c.l.b16 %v1722
    %v2010 = vunpack.c.h.b16 %v1722
    %v2011 = vunpack.c.l.b16 %v1723
    %v2012 = vunpack.c.h.b16 %v1723
    %v2013 = vunpack.c.l.b16 %v1724
    %v2014 = vunpack.c.h.b16 %v1724
    %v2015 = vunpack.c.l.b16 %v1725
    %v2016 = vunpack.c.h.b16 %v1725
    %v2017 = vunpack.c.l.b16 %v1726
    %v2018 = vunpack.c.h.b16 %v1726
    %v2019 = vunpack.c.l.b16 %v1727
    %v2020 = vunpack.c.h.b16 %v1727
    %v2021 = vunpack.c.l.b16 %v1728
    %v2022 = vunpack.c.h.b16 %v1728
    %v2023 = vunpack.c.l.b16 %v1729
    %v2024 = vunpack.c.h.b16 %v1729
    %v2025 = vunpack.c.l.b16 %v1730
    %v2026 = vunpack.c.h.b16 %v1730
    %v2027 = vunpack.c.l.b16 %v1731
    %v2028 = vunpack.c.h.b16 %v1731
    %v2029 = vunpack.c.l.b16 %v1732
    %v2030 = vunpack.c.h.b16 %v1732
    %v2031 = vunpack.c.l.b16 %v1733
    %v2032 = vunpack.c.h.b16 %v1733
    %v2033 = vunpack.c.l.b16 %v1734
    %v2034 = vunpack.c.h.b16 %v1734
    %v2035 = vunpack.c.l.b16 %v1735
    %v2036 = vunpack.c.h.b16 %v1735
    %v2037 = vunpack.c.l.b16 %v1736
    %v2038 = vunpack.c.h.b16 %v1736
    %v2039 = vunpack.c.l.b16 %v1737
    %v2040 = vunpack.c.h.b16 %v1737
    %v2041 = vunpack.c.l.b16 %v1738
    %v2042 = vunpack.c.h.b16 %v1738
    %v2043 = vunpack.c.l.b16 %v1739
    %v2044 = vunpack.c.h.b16 %v1739
    %v2045 = vunpack.c.l.b16 %v1740
    %v2046 = vunpack.c.h.b16 %v1740
    %v2047 = vpack.c.b16 %v1853, %v1851
    %v2048 = vpack.c.b16 %v1854, %v1852
    %v2049 = vpack.c.b16 %v1857, %v1855
    %v2050 = vpack.c.b16 %v1858, %v1856
    %v2051 = vpack.c.b16 %v1861, %v1859
    %v2052 = vpack.c.b16 %v1862, %v1860
    %v2053 = vpack.c.b16 %v1865, %v1863
    %v2054 = vpack.c.b16 %v1866, %v1864
    %v2055 = vpack.c.b16 %v1869, %v1867
    %v2056 = vpack.c.b16 %v1870, %v1868
    %v2057 = vpack.c.b16 %v1873, %v1871
    %v2058 = vpack.c.b16 %v1874, %v1872
    %v2059 = vpack.c.b16 %v1877, %v1875
    %v2060 = vpack.c.b16 %v1878, %v1876
    %v2061 = vpack.c.b16 %v1881, %v1879
    %v2062 = vpack.c.b16 %v1882, %v1880
    %v2063 = vpack.c.b16 %v1885, %v1883
    %v2064 = vpack.c.b16 %v1886, %v1884
    %v2065 = vpack.c.b16 %v1889, %v1887
    %v2066 = vpack.c.b16 %v1890, %v1888
    %v2067 = vpack.c.b16 %v1893, %v1891
    %v2068 = vpack.c.b16 %v1894, %v1892
    %v2069 = vpack.c.b16 %v1897, %v1895
    %v2070 = vpack.c.b16 %v1898, %v1896
    %v2071 = vpack.c.b16 %v1901, %v1899
    %v2072 = vpack.c.b16 %v1902, %v1900
    %v2073 = vpack.c.b16 %v1905, %v1903
    %v2074 = vpack.c.b16 %v1906, %v1904
    %v2075 = vpack.c.b16 %v1909, %v1907
    %v2076 = vpack.c.b16 %v1910, %v1908
    %v2077 = vpack.c.b16 %v1913, %v1911
    %v2078 = vpack.c.b16 %v1914, %v1912
    %v2079 = vpack.c.b16 %v1917, %v1915
    %v2080 = vpack.c.b16 %v1918, %v1916
    %v2081 = vpack.c.b16 %v1921, %v1919
    %v2082 = vpack.c.b16 %v1922, %v1920
    %v2083 = vpack.c.b16 %v1925, %v1923
    %v2084 = vpack.c.b16 %v1926, %v1924
    %v2085 = vpack.c.b16 %v1929, %v1927
    %v2086 = vpack.c.b16 %v1930, %v1928
    %v2087 = vpack.c.b16 %v1933, %v1931
    %v2088 = vpack.c.b16 %v1934, %v1932
    %v2089 = vpack.c.b16 %v1937, %v1935
    %v2090 = vpack.c.b16 %v1938, %v1936
    %v2091 = vpack.c.b16 %v1941, %v1939
    %v2092 = vpack.c.b16 %v1942, %v1940
    %v2093 = vpack.c.b16 %v1945, %v1943
    %v2094 = vpack.c.b16 %v1946, %v1944
    %v2095 = vpack.c.b16 %v1949, %v1947
    %v2096 = vpack.c.b16 %v1950, %v1948
    %v2097 = vpack.c.b16 %v1953, %v1951
    %v2098 = vpack.c.b16 %v1954, %v1952
    %v2099 = vpack.c.b16 %v1957, %v1955
    %v2100 = vpack.c.b16 %v1958, %v1956
    %v2101 = vpack.c.b16 %v1961, %v1959
    %v2102 = vpack.c.b16 %v1962, %v1960
    %v2103 = vpack.c.b16 %v1965, %v1963
    %v2104 = vpack.c.b16 %v1966, %v1964
    %v2105 = vpack.c.b16 %v1969, %v1967
    %v2106 = vpack.c.b16 %v1970, %v1968
    %v2107 = vpack.c.b16 %v1973, %v1971
    %v2108 = vpack.c.b16 %v1974, %v1972
    %v2109 = vpack.c.b16 %v1977, %v1975
    %v2110 = vpack.c.b16 %v1978, %v1976
    %v2111 = vpack.c.b16 %v1981, %v1979
    %v2112 = vpack.c.b16 %v1982, %v1980
    %v2113 = vpack.c.b16 %v1985, %v1983
    %v2114 = vpack.c.b16 %v1986, %v1984
    %v2115 = vpack.c.b16 %v1989, %v1987
    %v2116 = vpack.c.b16 %v1990, %v1988
    %v2117 = vpack.c.b16 %v1993, %v1991
    %v2118 = vpack.c.b16 %v1994, %v1992
    %v2119 = vpack.c.b16 %v1997, %v1995
    %v2120 = vpack.c.b16 %v1998, %v1996
    %v2121 = vpack.c.b16 %v2001, %v1999
    %v2122 = vpack.c.b16 %v2002, %v2000
    %v2123 = vpack.c.b16 %v2005, %v2003
    %v2124 = vpack.c.b16 %v2006, %v2004
    %v2125 = vpack.c.b16 %v2009, %v2007
    %v2126 = vpack.c.b16 %v2010, %v2008
    %v2127 = vpack.c.b16 %v2013, %v2011
    %v2128 = vpack.c.b16 %v2014, %v2012
    %v2129 = vpack.c.b16 %v2017, %v2015
    %v2130 = vpack.c.b16 %v2018, %v2016
    %v2131 = vpack.c.b16 %v2021, %v2019
    %v2132 = vpack.c.b16 %v2022, %v2020
    %v2133 = vpack.c.b16 %v2025, %v2023
    %v2134 = vpack.c.b16 %v2026, %v2024
    %v2135 = vpack.c.b16 %v2029, %v2027
    %v2136 = vpack.c.b16 %v2030, %v2028
    %v2137 = vpack.c.b16 %v2033, %v2031
    %v2138 = vpack.c.b16 %v2034, %v2032
    %v2139 = vpack.c.b16 %v2037, %v2035
    %v2140 = vpack.c.b16 %v2038, %v2036
    %v2141 = vpack.c.b16 %v2041, %v2039
    %v2142 = vpack.c.b16 %v2042, %v2040
    %v2143 = vpack.c.b16 %v2045, %v2043
    %v2144 = vpack.c.b16 %v2046, %v2044
    %vm2243 = vcmask 130048
    %v2245 = vsel %vm2243, %v1593, 0
    %v2248 = vsel %vm2243, %v1600, 0
    %v2251 = vsel %vm2243, %v1607, 0
    %v2254 = vsel %vm2243, %v1614, 0
    %v2257 = vsel %vm2243, %v1621, 0
    %v2260 = vsel %vm2243, %v1628, 0
    %v2263 = vsel %vm2243, %v1635, 0
    %v2266 = vsel %vm2243, %v1642, 0
    %2268 = vmatprep.subr.bf16.mxu0 %v2048
    %2269 = vmatpush1.bf16.msra.mxu0 %v2047
    %2270 = vmatprep.subr.bf16.mxu0 %v2050
    %2271 = vmatpush1.bf16.msra.mxu0 %v2049
    %2272 = vmatprep.subr.bf16.mxu0 %v2052
    %2273 = vmatpush1.bf16.msra.mxu0 %v2051
    %2274 = vmatprep.subr.bf16.mxu0 %v2054
    %2275 = vmatpush1.bf16.msra.mxu0 %v2053
    %2276 = vmatprep.subr.bf16.mxu0 %v2056
    %2277 = vmatpush1.bf16.msra.mxu0 %v2055
    %2278 = vmatprep.subr.bf16.mxu0 %v2058
    %2279 = vmatpush1.bf16.msra.mxu0 %v2057
    %2280 = vmatprep.subr.bf16.mxu0 %v2060
    %2281 = vmatpush1.bf16.msra.mxu0 %v2059
    %2282 = vmatprep.subr.bf16.mxu0 %v2062
    %2283 = vmatpush1.bf16.msra.mxu0 %v2061
    %2284 = vmatprep.subr.bf16.mxu0 %v2064
    %2285 = vmatpush1.bf16.msra.mxu0 %v2063
    %2286 = vmatprep.subr.bf16.mxu0 %v2066
    %2287 = vmatpush1.bf16.msra.mxu0 %v2065
    %2288 = vmatprep.subr.bf16.mxu0 %v2068
    %2289 = vmatpush1.bf16.msra.mxu0 %v2067
    %2290 = vmatprep.subr.bf16.mxu0 %v2070
    %2291 = vmatpush1.bf16.msra.mxu0 %v2069
    %2292 = vmatprep.subr.bf16.mxu0 %v2072
    %2293 = vmatpush1.bf16.msra.mxu0 %v2071
    %2294 = vmatprep.subr.bf16.mxu0 %v2074
    %2295 = vmatpush1.bf16.msra.mxu0 %v2073
    %2296 = vmatprep.subr.bf16.mxu0 %v2076
    %2297 = vmatpush1.bf16.msra.mxu0 %v2075
    %2298 = vmatprep.subr.bf16.mxu0 %v2078
    %2299 = vmatpush1.bf16.msra.mxu0 %v2077
    %2300 = vmatprep.mubr.bf16.mxu0 %v1588
    %2301 = vmatmul.mubr.bf16.gmra.mrb[0].mxu0 %v1587
    %v2302 = vpop.f32.mrb[0].mxu0
    %v2303 = vadd.f32 %v1746, %v2302
    %v2304 = vpop.f32.mrb[0].mxu0
    %v2305 = vadd.f32 %v1750, %v2304
    %v2306 = vpop.f32.mrb[0].mxu0
    %v2307 = vadd.f32 %v1746, %v2306
    %v2308 = vpop.f32.mrb[0].mxu0
    %v2309 = vadd.f32 %v1750, %v2308
    %2310 = vmatprep.mubr.bf16.mxu0 %v1595
    %2311 = vmatmul.mubr.bf16.gmra.mrb[0].mxu0 %v1594
    %v2312 = vpop.f32.mrb[0].mxu0
    %v2313 = vadd.f32 %v1746, %v2312
    %v2314 = vpop.f32.mrb[0].mxu0
    %v2315 = vadd.f32 %v1750, %v2314
    %v2316 = vpop.f32.mrb[0].mxu0
    %v2317 = vadd.f32 %v1746, %v2316
    %v2318 = vpop.f32.mrb[0].mxu0
    %v2319 = vadd.f32 %v1750, %v2318
    %2320 = vmatprep.mubr.bf16.mxu0 %v1602
    %2321 = vmatmul.mubr.bf16.gmra.mrb[0].mxu0 %v1601
    %v2322 = vpop.f32.mrb[0].mxu0
    %v2323 = vadd.f32 %v1746, %v2322
    %v2324 = vpop.f32.mrb[0].mxu0
    %v2325 = vadd.f32 %v1750, %v2324
    %v2326 = vpop.f32.mrb[0].mxu0
    %v2327 = vadd.f32 %v1746, %v2326
    %v2328 = vpop.f32.mrb[0].mxu0
    %v2329 = vadd.f32 %v1750, %v2328
    %2330 = vmatprep.mubr.bf16.mxu0 %v1609
    %2331 = vmatmul.mubr.bf16.gmra.mrb[0].mxu0 %v1608
    %v2332 = vpop.f32.mrb[0].mxu0
    %v2333 = vadd.f32 %v1746, %v2332
    %v2334 = vpop.f32.mrb[0].mxu0
    %v2335 = vadd.f32 %v1750, %v2334
    %v2336 = vpop.f32.mrb[0].mxu0
    %v2337 = vadd.f32 %v1746, %v2336
    %v2338 = vpop.f32.mrb[0].mxu0
    %v2339 = vadd.f32 %v1750, %v2338
    %2340 = vmatprep.mubr.bf16.mxu0 %v1616
    %2341 = vmatmul.mubr.bf16.gmra.mrb[0].mxu0 %v1615
    %v2342 = vpop.f32.mrb[0].mxu0
    %v2343 = vadd.f32 %v1746, %v2342
    %v2344 = vpop.f32.mrb[0].mxu0
    %v2345 = vadd.f32 %v1750, %v2344
    %v2346 = vpop.f32.mrb[0].mxu0
    %v2347 = vadd.f32 %v1746, %v2346
    %v2348 = vpop.f32.mrb[0].mxu0
    %v2349 = vadd.f32 %v1750, %v2348
    %2350 = vmatprep.mubr.bf16.mxu0 %v1623
    %2351 = vmatmul.mubr.bf16.gmra.mrb[0].mxu0 %v1622
    %v2352 = vpop.f32.mrb[0].mxu0
    %v2353 = vadd.f32 %v1746, %v2352
    %v2354 = vpop.f32.mrb[0].mxu0
    %v2355 = vadd.f32 %v1750, %v2354
    %v2356 = vpop.f32.mrb[0].mxu0
    %v2357 = vadd.f32 %v1746, %v2356
    %v2358 = vpop.f32.mrb[0].mxu0
    %v2359 = vadd.f32 %v1750, %v2358
    %2360 = vmatprep.mubr.bf16.mxu0 %v1630
    %2361 = vmatmul.mubr.bf16.gmra.mrb[0].mxu0 %v1629
    %v2362 = vpop.f32.mrb[0].mxu0
    %v2363 = vadd.f32 %v1746, %v2362
    %v2364 = vpop.f32.mrb[0].mxu0
    %v2365 = vadd.f32 %v1750, %v2364
    %v2366 = vpop.f32.mrb[0].mxu0
    %v2367 = vadd.f32 %v1746, %v2366
    %v2368 = vpop.f32.mrb[0].mxu0
    %v2369 = vadd.f32 %v1750, %v2368
    %2370 = vmatprep.mubr.bf16.mxu0 %v1637
    %2371 = vmatmul.mubr.bf16.gmra.mrb[0].mxu0 %v1636
    %v2372 = vpop.f32.mrb[0].mxu0
    %v2373 = vadd.f32 %v1746, %v2372
    %v2374 = vpop.f32.mrb[0].mxu0
    %v2375 = vadd.f32 %v1750, %v2374
    %v2376 = vpop.f32.mrb[0].mxu0
    %v2377 = vadd.f32 %v1746, %v2376
    %v2378 = vpop.f32.mrb[0].mxu0
    %v2379 = vadd.f32 %v1750, %v2378
    %2380 = vdwg.mxu0
    %2381 = vmatprep.subr.bf16.mxu0 %v2080
    %2382 = vmatpush1.bf16.msra.mxu0 %v2079
    %2383 = vmatprep.subr.bf16.mxu0 %v2082
    %2384 = vmatpush1.bf16.msra.mxu0 %v2081
    %2385 = vmatprep.subr.bf16.mxu0 %v2084
    %2386 = vmatpush1.bf16.msra.mxu0 %v2083
    %2387 = vmatprep.subr.bf16.mxu0 %v2086
    %2388 = vmatpush1.bf16.msra.mxu0 %v2085
    %2389 = vmatprep.subr.bf16.mxu0 %v2088
    %2390 = vmatpush1.bf16.msra.mxu0 %v2087
    %2391 = vmatprep.subr.bf16.mxu0 %v2090
    %2392 = vmatpush1.bf16.msra.mxu0 %v2089
    %2393 = vmatprep.subr.bf16.mxu0 %v2092
    %2394 = vmatpush1.bf16.msra.mxu0 %v2091
    %2395 = vmatprep.subr.bf16.mxu0 %v2094
    %2396 = vmatpush1.bf16.msra.mxu0 %v2093
    %2397 = vmatprep.subr.bf16.mxu0 %v2096
    %2398 = vmatpush1.bf16.msra.mxu0 %v2095
    %2399 = vmatprep.subr.bf16.mxu0 %v2098
    %2400 = vmatpush1.bf16.msra.mxu0 %v2097
    %2401 = vmatprep.subr.bf16.mxu0 %v2100
    %2402 = vmatpush1.bf16.msra.mxu0 %v2099
    %2403 = vmatprep.subr.bf16.mxu0 %v2102
    %2404 = vmatpush1.bf16.msra.mxu0 %v2101
    %2405 = vmatprep.subr.bf16.mxu0 %v2104
    %2406 = vmatpush1.bf16.msra.mxu0 %v2103
    %2407 = vmatprep.subr.bf16.mxu0 %v2106
    %2408 = vmatpush1.bf16.msra.mxu0 %v2105
    %2409 = vmatprep.subr.bf16.mxu0 %v2108
    %2410 = vmatpush1.bf16.msra.mxu0 %v2107
    %2411 = vmatprep.subr.bf16.mxu0 %v2110
    %2412 = vmatpush1.bf16.msra.mxu0 %v2109
    %2413 = vmatprep.mubr.bf16.mxu0 %v1590
    %2414 = vmatmul.mubr.bf16.gmra.mrb[0].mxu0 %v1589
    %v2415 = vpop.f32.mrb[0].mxu0
    %v2416 = vadd.f32 %v2303, %v2415
    %v2417 = vpop.f32.mrb[0].mxu0
    %v2418 = vadd.f32 %v2305, %v2417
    %v2419 = vpop.f32.mrb[0].mxu0
    %v2420 = vadd.f32 %v2307, %v2419
    %v2421 = vpop.f32.mrb[0].mxu0
    %v2422 = vadd.f32 %v2309, %v2421
    %2423 = vmatprep.mubr.bf16.mxu0 %v1597
    %2424 = vmatmul.mubr.bf16.gmra.mrb[0].mxu0 %v1596
    %v2425 = vpop.f32.mrb[0].mxu0
    %v2426 = vadd.f32 %v2313, %v2425
    %v2427 = vpop.f32.mrb[0].mxu0
    %v2428 = vadd.f32 %v2315, %v2427
    %v2429 = vpop.f32.mrb[0].mxu0
    %v2430 = vadd.f32 %v2317, %v2429
    %v2431 = vpop.f32.mrb[0].mxu0
    %v2432 = vadd.f32 %v2319, %v2431
    %2433 = vmatprep.mubr.bf16.mxu0 %v1604
    %2434 = vmatmul.mubr.bf16.gmra.mrb[0].mxu0 %v1603
    %v2435 = vpop.f32.mrb[0].mxu0
    %v2436 = vadd.f32 %v2323, %v2435
    %v2437 = vpop.f32.mrb[0].mxu0
    %v2438 = vadd.f32 %v2325, %v2437
    %v2439 = vpop.f32.mrb[0].mxu0
    %v2440 = vadd.f32 %v2327, %v2439
    %v2441 = vpop.f32.mrb[0].mxu0
    %v2442 = vadd.f32 %v2329, %v2441
    %2443 = vmatprep.mubr.bf16.mxu0 %v1611
    %2444 = vmatmul.mubr.bf16.gmra.mrb[0].mxu0 %v1610
    %v2445 = vpop.f32.mrb[0].mxu0
    %v2446 = vadd.f32 %v2333, %v2445
    %v2447 = vpop.f32.mrb[0].mxu0
    %v2448 = vadd.f32 %v2335, %v2447
    %v2449 = vpop.f32.mrb[0].mxu0
    %v2450 = vadd.f32 %v2337, %v2449
    %v2451 = vpop.f32.mrb[0].mxu0
    %v2452 = vadd.f32 %v2339, %v2451
    %2453 = vmatprep.mubr.bf16.mxu0 %v1618
    %2454 = vmatmul.mubr.bf16.gmra.mrb[0].mxu0 %v1617
    %v2455 = vpop.f32.mrb[0].mxu0
    %v2456 = vadd.f32 %v2343, %v2455
    %v2457 = vpop.f32.mrb[0].mxu0
    %v2458 = vadd.f32 %v2345, %v2457
    %v2459 = vpop.f32.mrb[0].mxu0
    %v2460 = vadd.f32 %v2347, %v2459
    %v2461 = vpop.f32.mrb[0].mxu0
    %v2462 = vadd.f32 %v2349, %v2461
    %2463 = vmatprep.mubr.bf16.mxu0 %v1625
    %2464 = vmatmul.mubr.bf16.gmra.mrb[0].mxu0 %v1624
    %v2465 = vpop.f32.mrb[0].mxu0
    %v2466 = vadd.f32 %v2353, %v2465
    %v2467 = vpop.f32.mrb[0].mxu0
    %v2468 = vadd.f32 %v2355, %v2467
    %v2469 = vpop.f32.mrb[0].mxu0
    %v2470 = vadd.f32 %v2357, %v2469
    %v2471 = vpop.f32.mrb[0].mxu0
    %v2472 = vadd.f32 %v2359, %v2471
    %2473 = vmatprep.mubr.bf16.mxu0 %v1632
    %2474 = vmatmul.mubr.bf16.gmra.mrb[0].mxu0 %v1631
    %v2475 = vpop.f32.mrb[0].mxu0
    %v2476 = vadd.f32 %v2363, %v2475
    %v2477 = vpop.f32.mrb[0].mxu0
    %v2478 = vadd.f32 %v2365, %v2477
    %v2479 = vpop.f32.mrb[0].mxu0
    %v2480 = vadd.f32 %v2367, %v2479
    %v2481 = vpop.f32.mrb[0].mxu0
    %v2482 = vadd.f32 %v2369, %v2481
    %2483 = vmatprep.mubr.bf16.mxu0 %v1639
    %2484 = vmatmul.mubr.bf16.gmra.mrb[0].mxu0 %v1638
    %v2485 = vpop.f32.mrb[0].mxu0
    %v2486 = vadd.f32 %v2373, %v2485
    %v2487 = vpop.f32.mrb[0].mxu0
    %v2488 = vadd.f32 %v2375, %v2487
    %v2489 = vpop.f32.mrb[0].mxu0
    %v2490 = vadd.f32 %v2377, %v2489
    %v2491 = vpop.f32.mrb[0].mxu0
    %v2492 = vadd.f32 %v2379, %v2491
    %2493 = vdwg.mxu0
    %2494 = vmatprep.subr.bf16.mxu0 %v2112
    %2495 = vmatpush1.bf16.msra.mxu0 %v2111
    %2496 = vmatprep.subr.bf16.mxu0 %v2114
    %2497 = vmatpush1.bf16.msra.mxu0 %v2113
    %2498 = vmatprep.subr.bf16.mxu0 %v2116
    %2499 = vmatpush1.bf16.msra.mxu0 %v2115
    %2500 = vmatprep.subr.bf16.mxu0 %v2118
    %2501 = vmatpush1.bf16.msra.mxu0 %v2117
    %2502 = vmatprep.subr.bf16.mxu0 %v2120
    %2503 = vmatpush1.bf16.msra.mxu0 %v2119
    %2504 = vmatprep.subr.bf16.mxu0 %v2122
    %2505 = vmatpush1.bf16.msra.mxu0 %v2121
    %2506 = vmatprep.subr.bf16.mxu0 %v2124
    %2507 = vmatpush1.bf16.msra.mxu0 %v2123
    %2508 = vmatprep.subr.bf16.mxu0 %v2126
    %2509 = vmatpush1.bf16.msra.mxu0 %v2125
    %2510 = vmatprep.subr.bf16.mxu0 %v2128
    %2511 = vmatpush1.bf16.msra.mxu0 %v2127
    %2512 = vmatprep.subr.bf16.mxu0 %v2130
    %2513 = vmatpush1.bf16.msra.mxu0 %v2129
    %2514 = vmatprep.subr.bf16.mxu0 %v2132
    %2515 = vmatpush1.bf16.msra.mxu0 %v2131
    %2516 = vmatprep.subr.bf16.mxu0 %v2134
    %2517 = vmatpush1.bf16.msra.mxu0 %v2133
    %2518 = vmatprep.subr.bf16.mxu0 %v2136
    %2519 = vmatpush1.bf16.msra.mxu0 %v2135
    %2520 = vmatprep.subr.bf16.mxu0 %v2138
    %2521 = vmatpush1.bf16.msra.mxu0 %v2137
    %2522 = vmatprep.subr.bf16.mxu0 %v2140
    %2523 = vmatpush1.bf16.msra.mxu0 %v2139
    %2524 = vmatprep.subr.bf16.mxu0 %v2142
    %2525 = vmatpush1.bf16.msra.mxu0 %v2141
    %2526 = vmatprep.mubr.bf16.mxu0 %v1592
    %2527 = vmatmul.mubr.bf16.gmra.mrb[0].mxu0 %v1591
    %v2528 = vpop.f32.mrb[0].mxu0
    %v2529 = vadd.f32 %v2416, %v2528
    %v2530 = vpop.f32.mrb[0].mxu0
    %v2531 = vadd.f32 %v2418, %v2530
    %v2532 = vpop.f32.mrb[0].mxu0
    %v2533 = vadd.f32 %v2420, %v2532
    %v2534 = vpop.f32.mrb[0].mxu0
    %v2535 = vadd.f32 %v2422, %v2534
    %2536 = vmatprep.mubr.bf16.mxu0 %v1599
    %2537 = vmatmul.mubr.bf16.gmra.mrb[0].mxu0 %v1598
    %v2538 = vpop.f32.mrb[0].mxu0
    %v2539 = vadd.f32 %v2426, %v2538
    %v2540 = vpop.f32.mrb[0].mxu0
    %v2541 = vadd.f32 %v2428, %v2540
    %v2542 = vpop.f32.mrb[0].mxu0
    %v2543 = vadd.f32 %v2430, %v2542
    %v2544 = vpop.f32.mrb[0].mxu0
    %v2545 = vadd.f32 %v2432, %v2544
    %2546 = vmatprep.mubr.bf16.mxu0 %v1606
    %2547 = vmatmul.mubr.bf16.gmra.mrb[0].mxu0 %v1605
    %v2548 = vpop.f32.mrb[0].mxu0
    %v2549 = vadd.f32 %v2436, %v2548
    %v2550 = vpop.f32.mrb[0].mxu0
    %v2551 = vadd.f32 %v2438, %v2550
    %v2552 = vpop.f32.mrb[0].mxu0
    %v2553 = vadd.f32 %v2440, %v2552
    %v2554 = vpop.f32.mrb[0].mxu0
    %v2555 = vadd.f32 %v2442, %v2554
    %2556 = vmatprep.mubr.bf16.mxu0 %v1613
    %2557 = vmatmul.mubr.bf16.gmra.mrb[0].mxu0 %v1612
    %v2558 = vpop.f32.mrb[0].mxu0
    %v2559 = vadd.f32 %v2446, %v2558
    %v2560 = vpop.f32.mrb[0].mxu0
    %v2561 = vadd.f32 %v2448, %v2560
    %v2562 = vpop.f32.mrb[0].mxu0
    %v2563 = vadd.f32 %v2450, %v2562
    %v2564 = vpop.f32.mrb[0].mxu0
    %v2565 = vadd.f32 %v2452, %v2564
    %2566 = vmatprep.mubr.bf16.mxu0 %v1620
    %2567 = vmatmul.mubr.bf16.gmra.mrb[0].mxu0 %v1619
    %v2568 = vpop.f32.mrb[0].mxu0
    %v2569 = vadd.f32 %v2456, %v2568
    %v2570 = vpop.f32.mrb[0].mxu0
    %v2571 = vadd.f32 %v2458, %v2570
    %v2572 = vpop.f32.mrb[0].mxu0
    %v2573 = vadd.f32 %v2460, %v2572
    %v2574 = vpop.f32.mrb[0].mxu0
    %v2575 = vadd.f32 %v2462, %v2574
    %2576 = vmatprep.mubr.bf16.mxu0 %v1627
    %2577 = vmatmul.mubr.bf16.gmra.mrb[0].mxu0 %v1626
    %v2578 = vpop.f32.mrb[0].mxu0
    %v2579 = vadd.f32 %v2466, %v2578
    %v2580 = vpop.f32.mrb[0].mxu0
    %v2581 = vadd.f32 %v2468, %v2580
    %v2582 = vpop.f32.mrb[0].mxu0
    %v2583 = vadd.f32 %v2470, %v2582
    %v2584 = vpop.f32.mrb[0].mxu0
    %v2585 = vadd.f32 %v2472, %v2584
    %2586 = vmatprep.mubr.bf16.mxu0 %v1634
    %2587 = vmatmul.mubr.bf16.gmra.mrb[0].mxu0 %v1633
    %v2588 = vpop.f32.mrb[0].mxu0
    %v2589 = vadd.f32 %v2476, %v2588
    %v2590 = vpop.f32.mrb[0].mxu0
    %v2591 = vadd.f32 %v2478, %v2590
    %v2592 = vpop.f32.mrb[0].mxu0
    %v2593 = vadd.f32 %v2480, %v2592
    %v2594 = vpop.f32.mrb[0].mxu0
    %v2595 = vadd.f32 %v2482, %v2594
    %2596 = vmatprep.mubr.bf16.mxu0 %v1641
    %2597 = vmatmul.mubr.bf16.gmra.mrb[0].mxu0 %v1640
    %v2598 = vpop.f32.mrb[0].mxu0
    %v2599 = vadd.f32 %v2486, %v2598
    %v2600 = vpop.f32.mrb[0].mxu0
    %v2601 = vadd.f32 %v2488, %v2600
    %v2602 = vpop.f32.mrb[0].mxu0
    %v2603 = vadd.f32 %v2490, %v2602
    %v2604 = vpop.f32.mrb[0].mxu0
    %v2605 = vadd.f32 %v2492, %v2604
    %2606 = vdwg.mxu0
    %2607 = vmatprep.subr.bf16.mxu0 %v2144
    %2608 = vmatpush1.bf16.msra.mxu0 %v2143
    %2609 = vmatprep.subr.bf16.mxu0 0
    %2610 = vmatpush1.bf16.msra.mxu0 0
    %2611 = vmatprep.subr.bf16.mxu0 0
    %2612 = vmatpush1.bf16.msra.mxu0 0
    %2613 = vmatprep.subr.bf16.mxu0 0
    %2614 = vmatpush1.bf16.msra.mxu0 0
    %2615 = vmatprep.subr.bf16.mxu0 0
    %2616 = vmatpush1.bf16.msra.mxu0 0
    %2617 = vmatprep.subr.bf16.mxu0 0
    %2618 = vmatpush1.bf16.msra.mxu0 0
    %2619 = vmatprep.subr.bf16.mxu0 0
    %2620 = vmatpush1.bf16.msra.mxu0 0
    %2621 = vmatprep.subr.bf16.mxu0 0
    %2622 = vmatpush1.bf16.msra.mxu0 0
    %2623 = vmatprep.subr.bf16.mxu0 0
    %2624 = vmatpush1.bf16.msra.mxu0 0
    %2625 = vmatprep.subr.bf16.mxu0 0
    %2626 = vmatpush1.bf16.msra.mxu0 0
    %2627 = vmatprep.subr.bf16.mxu0 0
    %2628 = vmatpush1.bf16.msra.mxu0 0
    %2629 = vmatprep.subr.bf16.mxu0 0
    %2630 = vmatpush1.bf16.msra.mxu0 0
    %2631 = vmatprep.subr.bf16.mxu0 0
    %2632 = vmatpush1.bf16.msra.mxu0 0
    %2633 = vmatprep.subr.bf16.mxu0 0
    %2634 = vmatpush1.bf16.msra.mxu0 0
    %2635 = vmatprep.subr.bf16.mxu0 0
    %2636 = vmatpush1.bf16.msra.mxu0 0
    %2637 = vmatprep.subr.bf16.mxu0 0
    %2638 = vmatpush1.bf16.msra.mxu0 0
    %2639 = vmatprep.mubr.bf16.mxu0 0
    %2640 = vmatmul.mubr.bf16.gmra.mrb[0].mxu0 %v2245
    %v2641 = vpop.f32.mrb[0].mxu0
    %v2642 = vadd.f32 %v2529, %v2641
    %v2643 = vpop.f32.mrb[0].mxu0
    %v2644 = vadd.f32 %v2531, %v2643
    %v2645 = vpop.f32.mrb[0].mxu0
    %v2646 = vadd.f32 %v2533, %v2645
    %v2647 = vpop.f32.mrb[0].mxu0
    %v2648 = vadd.f32 %v2535, %v2647
    %2649 = vmatprep.mubr.bf16.mxu0 0
    %2650 = vmatmul.mubr.bf16.gmra.mrb[0].mxu0 %v2248
    %v2651 = vpop.f32.mrb[0].mxu0
    %v2652 = vadd.f32 %v2539, %v2651
    %v2653 = vpop.f32.mrb[0].mxu0
    %v2654 = vadd.f32 %v2541, %v2653
    %v2655 = vpop.f32.mrb[0].mxu0
    %v2656 = vadd.f32 %v2543, %v2655
    %v2657 = vpop.f32.mrb[0].mxu0
    %v2658 = vadd.f32 %v2545, %v2657
    %2659 = vmatprep.mubr.bf16.mxu0 0
    %2660 = vmatmul.mubr.bf16.gmra.mrb[0].mxu0 %v2251
    %v2661 = vpop.f32.mrb[0].mxu0
    %v2662 = vadd.f32 %v2549, %v2661
    %v2663 = vpop.f32.mrb[0].mxu0
    %v2664 = vadd.f32 %v2551, %v2663
    %v2665 = vpop.f32.mrb[0].mxu0
    %v2666 = vadd.f32 %v2553, %v2665
    %v2667 = vpop.f32.mrb[0].mxu0
    %v2668 = vadd.f32 %v2555, %v2667
    %2669 = vmatprep.mubr.bf16.mxu0 0
    %2670 = vmatmul.mubr.bf16.gmra.mrb[0].mxu0 %v2254
    %v2671 = vpop.f32.mrb[0].mxu0
    %v2672 = vadd.f32 %v2559, %v2671
    %v2673 = vpop.f32.mrb[0].mxu0
    %v2674 = vadd.f32 %v2561, %v2673
    %v2675 = vpop.f32.mrb[0].mxu0
    %v2676 = vadd.f32 %v2563, %v2675
    %v2677 = vpop.f32.mrb[0].mxu0
    %v2678 = vadd.f32 %v2565, %v2677
    %2679 = vmatprep.mubr.bf16.mxu0 0
    %2680 = vmatmul.mubr.bf16.gmra.mrb[0].mxu0 %v2257
    %v2681 = vpop.f32.mrb[0].mxu0
    %v2682 = vadd.f32 %v2569, %v2681
    %v2683 = vpop.f32.mrb[0].mxu0
    %v2684 = vadd.f32 %v2571, %v2683
    %v2685 = vpop.f32.mrb[0].mxu0
    %v2686 = vadd.f32 %v2573, %v2685
    %v2687 = vpop.f32.mrb[0].mxu0
    %v2688 = vadd.f32 %v2575, %v2687
    %2689 = vmatprep.mubr.bf16.mxu0 0
    %2690 = vmatmul.mubr.bf16.gmra.mrb[0].mxu0 %v2260
    %v2691 = vpop.f32.mrb[0].mxu0
    %v2692 = vadd.f32 %v2579, %v2691
    %v2693 = vpop.f32.mrb[0].mxu0
    %v2694 = vadd.f32 %v2581, %v2693
    %v2695 = vpop.f32.mrb[0].mxu0
    %v2696 = vadd.f32 %v2583, %v2695
    %v2697 = vpop.f32.mrb[0].mxu0
    %v2698 = vadd.f32 %v2585, %v2697
    %2699 = vmatprep.mubr.bf16.mxu0 0
    %2700 = vmatmul.mubr.bf16.gmra.mrb[0].mxu0 %v2263
    %v2701 = vpop.f32.mrb[0].mxu0
    %v2702 = vadd.f32 %v2589, %v2701
    %v2703 = vpop.f32.mrb[0].mxu0
    %v2704 = vadd.f32 %v2591, %v2703
    %v2705 = vpop.f32.mrb[0].mxu0
    %v2706 = vadd.f32 %v2593, %v2705
    %v2707 = vpop.f32.mrb[0].mxu0
    %v2708 = vadd.f32 %v2595, %v2707
    %2709 = vmatprep.mubr.bf16.mxu0 0
    %2710 = vmatmul.mubr.bf16.gmra.mrb[0].mxu0 %v2266
    %v2711 = vpop.f32.mrb[0].mxu0
    %v2712 = vadd.f32 %v2599, %v2711
    %v2713 = vpop.f32.mrb[0].mxu0
    %v2714 = vadd.f32 %v2601, %v2713
    %v2715 = vpop.f32.mrb[0].mxu0
    %v2716 = vadd.f32 %v2603, %v2715
    %v2717 = vpop.f32.mrb[0].mxu0
    %v2718 = vadd.f32 %v2605, %v2717
    %2719 = vdwg.mxu0
    %v2720 = vmax.f32 %v2642, 0.0
    %v2721 = vmax.f32 %v2644, 0.0
    %v2722 = vmax.f32 %v2646, 0.0
    %v2723 = vmax.f32 %v2648, 0.0
    %v2724 = vmax.f32 %v2652, 0.0
    %v2725 = vmax.f32 %v2654, 0.0
    %v2726 = vmax.f32 %v2656, 0.0
    %v2727 = vmax.f32 %v2658, 0.0
    %v2728 = vmax.f32 %v2662, 0.0
    %v2729 = vmax.f32 %v2664, 0.0
    %v2730 = vmax.f32 %v2666, 0.0
    %v2731 = vmax.f32 %v2668, 0.0
    %v2732 = vmax.f32 %v2672, 0.0
    %v2733 = vmax.f32 %v2674, 0.0
    %v2734 = vmax.f32 %v2676, 0.0
    %v2735 = vmax.f32 %v2678, 0.0
    %v2736 = vmax.f32 %v2682, 0.0
    %v2737 = vmax.f32 %v2684, 0.0
    %v2738 = vmax.f32 %v2686, 0.0
    %v2739 = vmax.f32 %v2688, 0.0
    %v2740 = vmax.f32 %v2692, 0.0
    %v2741 = vmax.f32 %v2694, 0.0
    %v2742 = vmax.f32 %v2696, 0.0
    %v2743 = vmax.f32 %v2698, 0.0
    %v2744 = vmax.f32 %v2702, 0.0
    %v2745 = vmax.f32 %v2704, 0.0
    %v2746 = vmax.f32 %v2706, 0.0
    %v2747 = vmax.f32 %v2708, 0.0
    %v2748 = vmax.f32 %v2712, 0.0
    %v2749 = vmax.f32 %v2714, 0.0
    %v2750 = vmax.f32 %v2716, 0.0
    %v2751 = vmax.f32 %v2718, 0.0
    %v2752 = vpack.c.bf16 %v2722, %v2720
    %v2753 = vpack.c.bf16 %v2723, %v2721
    %v2754 = vpack.c.bf16 %v2726, %v2724
    %v2755 = vpack.c.bf16 %v2727, %v2725
    %v2756 = vpack.c.bf16 %v2730, %v2728
    %v2757 = vpack.c.bf16 %v2731, %v2729
    %v2758 = vpack.c.bf16 %v2734, %v2732
    %v2759 = vpack.c.bf16 %v2735, %v2733
    %v2760 = vpack.c.bf16 %v2738, %v2736
    %v2761 = vpack.c.bf16 %v2739, %v2737
    %v2762 = vpack.c.bf16 %v2742, %v2740
    %v2763 = vpack.c.bf16 %v2743, %v2741
    %v2764 = vpack.c.bf16 %v2746, %v2744
    %v2765 = vpack.c.bf16 %v2747, %v2745
    %v2766 = vpack.c.bf16 %v2750, %v2748
    %v2767 = vpack.c.bf16 %v2751, %v2749
    %v2768 = vld [vmem:[#allocation7] sm:$0xf]
    %v2769 = vld [vmem:[#allocation7 + $0x4] sm:$0xf]
    %v2770 = vld [vmem:[#allocation7 + $0x8] sm:$0xf]
    %v2771 = vld [vmem:[#allocation7 + $0xc] sm:$0xf]
    %v2772 = vld [vmem:[#allocation7 + $0x10] sm:$0xf]
    %v2773 = vld [vmem:[#allocation7 + $0x14] sm:$0xf]
    %v2774 = vld [vmem:[#allocation7 + $0x18] sm:$0xf]
    %v2775 = vld [vmem:[#allocation7 + $0x1c] sm:$0xf]
    %v2776 = vld [vmem:[#allocation7 + $0x20] sm:$0xf]
    %v2777 = vld [vmem:[#allocation7 + $0x24] sm:$0xf]
    %v2778 = vld [vmem:[#allocation7 + $0x28] sm:$0xf]
    %v2779 = vld [vmem:[#allocation7 + $0x2c] sm:$0xf]
    %v2780 = vld [vmem:[#allocation7 + $0x30] sm:$0xf]
    %v2781 = vld [vmem:[#allocation7 + $0x34] sm:$0xf]
    %v2782 = vld [vmem:[#allocation7 + $0x38] sm:$0xf]
    %v2783 = vld [vmem:[#allocation7 + $0x3c] sm:$0xf]
    %v2784 = vld [vmem:[#allocation7 + $0x40] sm:$0xf]
    %v2785 = vld [vmem:[#allocation7 + $0x44] sm:$0xf]
    %v2786 = vld [vmem:[#allocation7 + $0x48] sm:$0xf]
    %v2787 = vld [vmem:[#allocation7 + $0x4c] sm:$0xf]
    %v2788 = vld [vmem:[#allocation7 + $0x50] sm:$0xf]
    %v2789 = vld [vmem:[#allocation7 + $0x54] sm:$0xf]
    %v2790 = vld [vmem:[#allocation7 + $0x58] sm:$0xf]
    %v2791 = vld [vmem:[#allocation7 + $0x5c] sm:$0xf]
    %v2792 = vld [vmem:[#allocation7 + $0x60] sm:$0xf]
    %v2793 = vld [vmem:[#allocation7 + $0x64] sm:$0xf]
    %v2794 = vld [vmem:[#allocation7 + $0x68] sm:$0xf]
    %v2795 = vld [vmem:[#allocation7 + $0x6c] sm:$0xf]
    %v2796 = vld [vmem:[#allocation7 + $0x70] sm:$0xf]
    %v2797 = vld [vmem:[#allocation7 + $0x74] sm:$0xf]
    %v2798 = vld [vmem:[#allocation7 + $0x78] sm:$0xf]
    %v2799 = vld [vmem:[#allocation7 + $0x7c] sm:$0xf]
    %v2800 = vld [vmem:[%s4] sm:$0x1]
    %v2802 = vlaneseq
    %v2803 = vshrl.u32 %v2802, 7
    %v2804 = vsub.s32 0, %v2803
    %v2805 = vrot.slane %v2800, %v2804
    %v2839 = vunpack.c.l.b16 %v2768
    %v2840 = vunpack.c.l.b16 %v2769
    %v2841 = vunpack.c.l.b16 %v2770
    %v2842 = vunpack.c.l.b16 %v2771
    %v2843 = vunpack.c.l.b16 %v2772
    %v2844 = vunpack.c.l.b16 %v2773
    %v2845 = vunpack.c.l.b16 %v2774
    %v2846 = vunpack.c.l.b16 %v2775
    %v2847 = vunpack.c.l.b16 %v2776
    %v2848 = vunpack.c.l.b16 %v2777
    %v2849 = vunpack.c.l.b16 %v2778
    %v2850 = vunpack.c.l.b16 %v2779
    %v2851 = vunpack.c.l.b16 %v2780
    %v2852 = vunpack.c.l.b16 %v2781
    %v2853 = vunpack.c.l.b16 %v2782
    %v2854 = vunpack.c.l.b16 %v2783
    %v2855 = vunpack.c.l.b16 %v2784
    %v2856 = vunpack.c.l.b16 %v2785
    %v2857 = vunpack.c.l.b16 %v2786
    %v2858 = vunpack.c.l.b16 %v2787
    %v2859 = vunpack.c.l.b16 %v2788
    %v2860 = vunpack.c.l.b16 %v2789
    %v2861 = vunpack.c.l.b16 %v2790
    %v2862 = vunpack.c.l.b16 %v2791
    %v2863 = vunpack.c.l.b16 %v2792
    %v2864 = vunpack.c.l.b16 %v2793
    %v2865 = vunpack.c.l.b16 %v2794
    %v2866 = vunpack.c.l.b16 %v2795
    %v2867 = vunpack.c.l.b16 %v2796
    %v2868 = vunpack.c.l.b16 %v2797
    %v2869 = vunpack.c.l.b16 %v2798
    %v2870 = vunpack.c.l.b16 %v2799
    %v2871 = vpack.c.b16 %v2840, %v2839
    %v2872 = vpack.c.b16 %v2842, %v2841
    %v2873 = vpack.c.b16 %v2844, %v2843
    %v2874 = vpack.c.b16 %v2846, %v2845
    %v2875 = vpack.c.b16 %v2848, %v2847
    %v2876 = vpack.c.b16 %v2850, %v2849
    %v2877 = vpack.c.b16 %v2852, %v2851
    %v2878 = vpack.c.b16 %v2854, %v2853
    %v2879 = vpack.c.b16 %v2856, %v2855
    %v2880 = vpack.c.b16 %v2858, %v2857
    %v2881 = vpack.c.b16 %v2860, %v2859
    %v2882 = vpack.c.b16 %v2862, %v2861
    %v2883 = vpack.c.b16 %v2864, %v2863
    %v2884 = vpack.c.b16 %v2866, %v2865
    %v2885 = vpack.c.b16 %v2868, %v2867
    %v2886 = vpack.c.b16 %v2870, %v2869
    %2903 = vmatprep.subr.bf16.mxu0 0
    %2904 = vmatpush1.bf16.msra.mxu0 %v2871
    %2905 = vmatprep.subr.bf16.mxu0 0
    %2906 = vmatpush1.bf16.msra.mxu0 %v2872
    %2907 = vmatprep.subr.bf16.mxu0 0
    %2908 = vmatpush1.bf16.msra.mxu0 %v2873
    %2909 = vmatprep.subr.bf16.mxu0 0
    %2910 = vmatpush1.bf16.msra.mxu0 %v2874
    %2911 = vmatprep.subr.bf16.mxu0 0
    %2912 = vmatpush1.bf16.msra.mxu0 %v2875
    %2913 = vmatprep.subr.bf16.mxu0 0
    %2914 = vmatpush1.bf16.msra.mxu0 %v2876
    %2915 = vmatprep.subr.bf16.mxu0 0
    %2916 = vmatpush1.bf16.msra.mxu0 %v2877
    %2917 = vmatprep.subr.bf16.mxu0 0
    %2918 = vmatpush1.bf16.msra.mxu0 %v2878
    %2919 = vmatprep.subr.bf16.mxu0 0
    %2920 = vmatpush1.bf16.msra.mxu0 %v2879
    %2921 = vmatprep.subr.bf16.mxu0 0
    %2922 = vmatpush1.bf16.msra.mxu0 %v2880
    %2923 = vmatprep.subr.bf16.mxu0 0
    %2924 = vmatpush1.bf16.msra.mxu0 %v2881
    %2925 = vmatprep.subr.bf16.mxu0 0
    %2926 = vmatpush1.bf16.msra.mxu0 %v2882
    %2927 = vmatprep.subr.bf16.mxu0 0
    %2928 = vmatpush1.bf16.msra.mxu0 %v2883
    %2929 = vmatprep.subr.bf16.mxu0 0
    %2930 = vmatpush1.bf16.msra.mxu0 %v2884
    %2931 = vmatprep.subr.bf16.mxu0 0
    %2932 = vmatpush1.bf16.msra.mxu0 %v2885
    %2933 = vmatprep.subr.bf16.mxu0 0
    %2934 = vmatpush1.bf16.msra.mxu0 %v2886
    %2935 = vmatprep.mubr.bf16.mxu0 %v2753
    %2936 = vmatmul.mubr.bf16.gmra.mrb[0].mxu0 %v2752
    %v2937 = vpop.f32.mrb[0].mxu0
    %v2938 = vadd.f32 %v2805, %v2937
    %v2939 = vpop.f32.mrb[0].mxu0
    %v2940 = vpop.f32.mrb[0].mxu0
    %v2941 = vadd.f32 %v2805, %v2940
    %v2942 = vpop.f32.mrb[0].mxu0
    %2943 = vmatprep.mubr.bf16.mxu0 %v2755
    %2944 = vmatmul.mubr.bf16.gmra.mrb[0].mxu0 %v2754
    %v2945 = vpop.f32.mrb[0].mxu0
    %v2946 = vadd.f32 %v2805, %v2945
    %v2947 = vpop.f32.mrb[0].mxu0
    %v2948 = vpop.f32.mrb[0].mxu0
    %v2949 = vadd.f32 %v2805, %v2948
    %v2950 = vpop.f32.mrb[0].mxu0
    %2951 = vmatprep.mubr.bf16.mxu0 %v2757
    %2952 = vmatmul.mubr.bf16.gmra.mrb[0].mxu0 %v2756
    %v2953 = vpop.f32.mrb[0].mxu0
    %v2954 = vadd.f32 %v2805, %v2953
    %v2955 = vpop.f32.mrb[0].mxu0
    %v2956 = vpop.f32.mrb[0].mxu0
    %v2957 = vadd.f32 %v2805, %v2956
    %v2958 = vpop.f32.mrb[0].mxu0
    %2959 = vmatprep.mubr.bf16.mxu0 %v2759
    %2960 = vmatmul.mubr.bf16.gmra.mrb[0].mxu0 %v2758
    %v2961 = vpop.f32.mrb[0].mxu0
    %v2962 = vadd.f32 %v2805, %v2961
    %v2963 = vpop.f32.mrb[0].mxu0
    %v2964 = vpop.f32.mrb[0].mxu0
    %v2965 = vadd.f32 %v2805, %v2964
    %v2966 = vpop.f32.mrb[0].mxu0
    %2967 = vmatprep.mubr.bf16.mxu0 %v2761
    %2968 = vmatmul.mubr.bf16.gmra.mrb[0].mxu0 %v2760
    %v2969 = vpop.f32.mrb[0].mxu0
    %v2970 = vadd.f32 %v2805, %v2969
    %v2971 = vpop.f32.mrb[0].mxu0
    %v2972 = vpop.f32.mrb[0].mxu0
    %v2973 = vadd.f32 %v2805, %v2972
    %v2974 = vpop.f32.mrb[0].mxu0
    %2975 = vmatprep.mubr.bf16.mxu0 %v2763
    %2976 = vmatmul.mubr.bf16.gmra.mrb[0].mxu0 %v2762
    %v2977 = vpop.f32.mrb[0].mxu0
    %v2978 = vadd.f32 %v2805, %v2977
    %v2979 = vpop.f32.mrb[0].mxu0
    %v2980 = vpop.f32.mrb[0].mxu0
    %v2981 = vadd.f32 %v2805, %v2980
    %v2982 = vpop.f32.mrb[0].mxu0
    %2983 = vmatprep.mubr.bf16.mxu0 %v2765
    %2984 = vmatmul.mubr.bf16.gmra.mrb[0].mxu0 %v2764
    %v2985 = vpop.f32.mrb[0].mxu0
    %v2986 = vadd.f32 %v2805, %v2985
    %v2987 = vpop.f32.mrb[0].mxu0
    %v2988 = vpop.f32.mrb[0].mxu0
    %v2989 = vadd.f32 %v2805, %v2988
    %v2990 = vpop.f32.mrb[0].mxu0
    %2991 = vmatprep.mubr.bf16.mxu0 %v2767
    %2992 = vmatmul.mubr.bf16.gmra.mrb[0].mxu0 %v2766
    %v2993 = vpop.f32.mrb[0].mxu0
    %v2994 = vadd.f32 %v2805, %v2993
    %v2995 = vpop.f32.mrb[0].mxu0
    %v2996 = vpop.f32.mrb[0].mxu0
    %v2997 = vadd.f32 %v2805, %v2996
    %v2998 = vpop.f32.mrb[0].mxu0
    %2999 = vdwg.mxu0
    %v3000 = vmax.f32 %v2938, 0.0
    %v3001 = vmax.f32 %v2941, 0.0
    %v3002 = vmax.f32 %v2946, 0.0
    %v3003 = vmax.f32 %v2949, 0.0
    %v3004 = vmax.f32 %v2954, 0.0
    %v3005 = vmax.f32 %v2957, 0.0
    %v3006 = vmax.f32 %v2962, 0.0
    %v3007 = vmax.f32 %v2965, 0.0
    %v3008 = vmax.f32 %v2970, 0.0
    %v3009 = vmax.f32 %v2973, 0.0
    %v3010 = vmax.f32 %v2978, 0.0
    %v3011 = vmax.f32 %v2981, 0.0
    %v3012 = vmax.f32 %v2986, 0.0
    %v3013 = vmax.f32 %v2989, 0.0
    %v3014 = vmax.f32 %v2994, 0.0
    %v3015 = vmax.f32 %v2997, 0.0
    %v3016 = vpack.c.bf16 %v3001, %v3000
    %v3017 = vpack.c.bf16 %v3003, %v3002
    %v3018 = vpack.c.bf16 %v3005, %v3004
    %v3019 = vpack.c.bf16 %v3007, %v3006
    %v3020 = vpack.c.bf16 %v3009, %v3008
    %v3021 = vpack.c.bf16 %v3011, %v3010
    %v3022 = vpack.c.bf16 %v3013, %v3012
    %v3023 = vpack.c.bf16 %v3015, %v3014
    %v3024 = vld [vmem:[#allocation8] sm:$0xf]
    %v3025 = vld [vmem:[#allocation8 + $0x4] sm:$0xf]
    %v3026 = vld [vmem:[#allocation8 + $0x8] sm:$0xf]
    %v3027 = vld [vmem:[#allocation8 + $0xc] sm:$0xf]
    %v3028 = vld [vmem:[#allocation8 + $0x10] sm:$0xf]
    %v3029 = vld [vmem:[#allocation8 + $0x14] sm:$0xf]
    %v3030 = vld [vmem:[#allocation8 + $0x18] sm:$0xf]
    %v3031 = vld [vmem:[#allocation8 + $0x1c] sm:$0xf]
    %v3032 = vld [vmem:[#allocation8 + $0x20] sm:$0xf]
    %v3033 = vld [vmem:[#allocation8 + $0x24] sm:$0xf]
    %v3034 = vld [vmem:[#allocation8 + $0x28] sm:$0xf]
    %v3035 = vld [vmem:[#allocation8 + $0x2c] sm:$0xf]
    %v3036 = vld [vmem:[#allocation8 + $0x30] sm:$0xf]
    %v3037 = vld [vmem:[#allocation8 + $0x34] sm:$0xf]
    %v3038 = vld [vmem:[#allocation8 + $0x38] sm:$0xf]
    %v3039 = vld [vmem:[#allocation8 + $0x3c] sm:$0xf]
    %v3040 = vld [vmem:[%s6] sm:$0x1]
    %v3042 = vlaneseq
    %v3043 = vshrl.u32 %v3042, 7
    %v3044 = vsub.s32 0, %v3043
    %v3045 = vrot.slane %v3040, %v3044
    %v3063 = vunpack.c.l.b16 %v3024
    %v3064 = vunpack.c.l.b16 %v3025
    %v3065 = vunpack.c.l.b16 %v3026
    %v3066 = vunpack.c.l.b16 %v3027
    %v3067 = vunpack.c.l.b16 %v3028
    %v3068 = vunpack.c.l.b16 %v3029
    %v3069 = vunpack.c.l.b16 %v3030
    %v3070 = vunpack.c.l.b16 %v3031
    %v3071 = vunpack.c.l.b16 %v3032
    %v3072 = vunpack.c.l.b16 %v3033
    %v3073 = vunpack.c.l.b16 %v3034
    %v3074 = vunpack.c.l.b16 %v3035
    %v3075 = vunpack.c.l.b16 %v3036
    %v3076 = vunpack.c.l.b16 %v3037
    %v3077 = vunpack.c.l.b16 %v3038
    %v3078 = vunpack.c.l.b16 %v3039
    %v3079 = vpack.c.b16 %v3064, %v3063
    %v3080 = vpack.c.b16 %v3066, %v3065
    %v3081 = vpack.c.b16 %v3068, %v3067
    %v3082 = vpack.c.b16 %v3070, %v3069
    %v3083 = vpack.c.b16 %v3072, %v3071
    %v3084 = vpack.c.b16 %v3074, %v3073
    %v3085 = vpack.c.b16 %v3076, %v3075
    %v3086 = vpack.c.b16 %v3078, %v3077
    %3095 = vmatprep.subr.bf16.mxu0 0
    %3096 = vmatpush1.bf16.msra.mxu0 %v3079
    %3097 = vmatprep.subr.bf16.mxu0 0
    %3098 = vmatpush1.bf16.msra.mxu0 %v3080
    %3099 = vmatprep.subr.bf16.mxu0 0
    %3100 = vmatpush1.bf16.msra.mxu0 %v3081
    %3101 = vmatprep.subr.bf16.mxu0 0
    %3102 = vmatpush1.bf16.msra.mxu0 %v3082
    %3103 = vmatprep.subr.bf16.mxu0 0
    %3104 = vmatpush1.bf16.msra.mxu0 %v3083
    %3105 = vmatprep.subr.bf16.mxu0 0
    %3106 = vmatpush1.bf16.msra.mxu0 %v3084
    %3107 = vmatprep.subr.bf16.mxu0 0
    %3108 = vmatpush1.bf16.msra.mxu0 %v3085
    %3109 = vmatprep.subr.bf16.mxu0 0
    %3110 = vmatpush1.bf16.msra.mxu0 %v3086
    %3111 = vmatprep.subr.bf16.mxu0 0
    %3112 = vmatpush1.bf16.msra.mxu0 0
    %3113 = vmatprep.subr.bf16.mxu0 0
    %3114 = vmatpush1.bf16.msra.mxu0 0
    %3115 = vmatprep.subr.bf16.mxu0 0
    %3116 = vmatpush1.bf16.msra.mxu0 0
    %3117 = vmatprep.subr.bf16.mxu0 0
    %3118 = vmatpush1.bf16.msra.mxu0 0
    %3119 = vmatprep.subr.bf16.mxu0 0
    %3120 = vmatpush1.bf16.msra.mxu0 0
    %3121 = vmatprep.subr.bf16.mxu0 0
    %3122 = vmatpush1.bf16.msra.mxu0 0
    %3123 = vmatprep.subr.bf16.mxu0 0
    %3124 = vmatpush1.bf16.msra.mxu0 0
    %3125 = vmatprep.subr.bf16.mxu0 0
    %3126 = vmatpush1.bf16.msra.mxu0 0
    %3127 = vmatprep.mubr.bf16.mxu0 0
    %3128 = vmatmul.mubr.bf16.gmra.mrb[0].mxu0 %v3016
    %v3129 = vpop.f32.mrb[0].mxu0
    %v3130 = vadd.f32 %v3045, %v3129
    %v3131 = vpop.f32.mrb[0].mxu0
    %v3132 = vpop.f32.mrb[0].mxu0
    %v3133 = vadd.f32 %v3045, %v3132
    %v3134 = vpop.f32.mrb[0].mxu0
    %3135 = vmatprep.mubr.bf16.mxu0 0
    %3136 = vmatmul.mubr.bf16.gmra.mrb[0].mxu0 %v3017
    %v3137 = vpop.f32.mrb[0].mxu0
    %v3138 = vadd.f32 %v3045, %v3137
    %v3139 = vpop.f32.mrb[0].mxu0
    %v3140 = vpop.f32.mrb[0].mxu0
    %v3141 = vadd.f32 %v3045, %v3140
    %v3142 = vpop.f32.mrb[0].mxu0
    %3143 = vmatprep.mubr.bf16.mxu0 0
    %3144 = vmatmul.mubr.bf16.gmra.mrb[0].mxu0 %v3018
    %v3145 = vpop.f32.mrb[0].mxu0
    %v3146 = vadd.f32 %v3045, %v3145
    %v3147 = vpop.f32.mrb[0].mxu0
    %v3148 = vpop.f32.mrb[0].mxu0
    %v3149 = vadd.f32 %v3045, %v3148
    %v3150 = vpop.f32.mrb[0].mxu0
    %3151 = vmatprep.mubr.bf16.mxu0 0
    %3152 = vmatmul.mubr.bf16.gmra.mrb[0].mxu0 %v3019
    %v3153 = vpop.f32.mrb[0].mxu0
    %v3154 = vadd.f32 %v3045, %v3153
    %v3155 = vpop.f32.mrb[0].mxu0
    %v3156 = vpop.f32.mrb[0].mxu0
    %v3157 = vadd.f32 %v3045, %v3156
    %v3158 = vpop.f32.mrb[0].mxu0
    %3159 = vmatprep.mubr.bf16.mxu0 0
    %3160 = vmatmul.mubr.bf16.gmra.mrb[0].mxu0 %v3020
    %v3161 = vpop.f32.mrb[0].mxu0
    %v3162 = vadd.f32 %v3045, %v3161
    %v3163 = vpop.f32.mrb[0].mxu0
    %v3164 = vpop.f32.mrb[0].mxu0
    %v3165 = vadd.f32 %v3045, %v3164
    %v3166 = vpop.f32.mrb[0].mxu0
    %3167 = vmatprep.mubr.bf16.mxu0 0
    %3168 = vmatmul.mubr.bf16.gmra.mrb[0].mxu0 %v3021
    %v3169 = vpop.f32.mrb[0].mxu0
    %v3170 = vadd.f32 %v3045, %v3169
    %v3171 = vpop.f32.mrb[0].mxu0
    %v3172 = vpop.f32.mrb[0].mxu0
    %v3173 = vadd.f32 %v3045, %v3172
    %v3174 = vpop.f32.mrb[0].mxu0
    %3175 = vmatprep.mubr.bf16.mxu0 0
    %3176 = vmatmul.mubr.bf16.gmra.mrb[0].mxu0 %v3022
    %v3177 = vpop.f32.mrb[0].mxu0
    %v3178 = vadd.f32 %v3045, %v3177
    %v3179 = vpop.f32.mrb[0].mxu0
    %v3180 = vpop.f32.mrb[0].mxu0
    %v3181 = vadd.f32 %v3045, %v3180
    %v3182 = vpop.f32.mrb[0].mxu0
    %3183 = vmatprep.mubr.bf16.mxu0 0
    %3184 = vmatmul.mubr.bf16.gmra.mrb[0].mxu0 %v3023
    %v3185 = vpop.f32.mrb[0].mxu0
    %v3186 = vadd.f32 %v3045, %v3185
    %v3187 = vpop.f32.mrb[0].mxu0
    %v3188 = vpop.f32.mrb[0].mxu0
    %v3189 = vadd.f32 %v3045, %v3188
    %v3190 = vpop.f32.mrb[0].mxu0
    %3191 = vdwg.mxu0
    %v3192 = vpack.c.bf16 %v3133, %v3130
    %v3193 = vpack.c.bf16 %v3141, %v3138
    %v3194 = vpack.c.bf16 %v3149, %v3146
    %v3195 = vpack.c.bf16 %v3157, %v3154
    %v3196 = vpack.c.bf16 %v3165, %v3162
    %v3197 = vpack.c.bf16 %v3173, %v3170
    %v3198 = vpack.c.bf16 %v3181, %v3178
    %v3199 = vpack.c.bf16 %v3189, %v3186
    %v3208 = vcombine.high %v3192, %v3192
    %v3210 = vunpack.c.l.s4 1966171168
    %v3211 = vunpack.c.0.s8 %v3210
    %v3212 = vlaneseq
    %v3213 = vshrl.u32 %v3212, 7
    %v3214 = vsub.s32 %v3211, %v3213
    %v3215 = vrot.slane %v3192, %v3214
    %v3217 = vunpack.c.l.s4 1966171168
    %v3218 = vunpack.c.0.s8 %v3217
    %v3219 = vlaneseq
    %v3220 = vshrl.u32 %v3219, 7
    %v3221 = vsub.s32 %v3218, %v3220
    %v3222 = vrot.slane %v3208, %v3221
    %v3223 = vcombine.high %v3215, %v3215
    %v3224 = vcombine.high %v3222, %v3222
    %v3226 = vunpack.c.l.s4 1966171168
    %v3227 = vunpack.c.0.s8 %v3226
    %v3228 = vlaneseq
    %v3229 = vshrl.u32 %v3228, 7
    %v3230 = vsub.s32 %v3227, %v3229
    %v3231 = vrot.slane %v3215, %v3230
    %v3233 = vunpack.c.l.s4 1966171168
    %v3234 = vunpack.c.0.s8 %v3233
    %v3235 = vlaneseq
    %v3236 = vshrl.u32 %v3235, 7
    %v3237 = vsub.s32 %v3234, %v3236
    %v3238 = vrot.slane %v3222, %v3237
    %v3240 = vunpack.c.l.s4 1966171168
    %v3241 = vunpack.c.0.s8 %v3240
    %v3242 = vlaneseq
    %v3243 = vshrl.u32 %v3242, 7
    %v3244 = vsub.s32 %v3241, %v3243
    %v3245 = vrot.slane %v3223, %v3244
    %v3247 = vunpack.c.l.s4 1966171168
    %v3248 = vunpack.c.0.s8 %v3247
    %v3249 = vlaneseq
    %v3250 = vshrl.u32 %v3249, 7
    %v3251 = vsub.s32 %v3248, %v3250
    %v3252 = vrot.slane %v3224, %v3251
    %v3253 = vcombine.high %v3231, %v3231
    %v3254 = vcombine.high %v3238, %v3238
    %v3255 = vcombine.high %v3245, %v3245
    %v3256 = vcombine.high %v3252, %v3252
    %v3257 = vcombine.high %v3193, %v3193
    %v3259 = vunpack.c.l.s4 1966171168
    %v3260 = vunpack.c.0.s8 %v3259
    %v3261 = vlaneseq
    %v3262 = vshrl.u32 %v3261, 7
    %v3263 = vsub.s32 %v3260, %v3262
    %v3264 = vrot.slane %v3193, %v3263
    %v3266 = vunpack.c.l.s4 1966171168
    %v3267 = vunpack.c.0.s8 %v3266
    %v3268 = vlaneseq
    %v3269 = vshrl.u32 %v3268, 7
    %v3270 = vsub.s32 %v3267, %v3269
    %v3271 = vrot.slane %v3257, %v3270
    %v3272 = vcombine.high %v3264, %v3264
    %v3273 = vcombine.high %v3271, %v3271
    %v3275 = vunpack.c.l.s4 1966171168
    %v3276 = vunpack.c.0.s8 %v3275
    %v3277 = vlaneseq
    %v3278 = vshrl.u32 %v3277, 7
    %v3279 = vsub.s32 %v3276, %v3278
    %v3280 = vrot.slane %v3264, %v3279
    %v3282 = vunpack.c.l.s4 1966171168
    %v3283 = vunpack.c.0.s8 %v3282
    %v3284 = vlaneseq
    %v3285 = vshrl.u32 %v3284, 7
    %v3286 = vsub.s32 %v3283, %v3285
    %v3287 = vrot.slane %v3271, %v3286
    %v3289 = vunpack.c.l.s4 1966171168
    %v3290 = vunpack.c.0.s8 %v3289
    %v3291 = vlaneseq
    %v3292 = vshrl.u32 %v3291, 7
    %v3293 = vsub.s32 %v3290, %v3292
    %v3294 = vrot.slane %v3272, %v3293
    %v3296 = vunpack.c.l.s4 1966171168
    %v3297 = vunpack.c.0.s8 %v3296
    %v3298 = vlaneseq
    %v3299 = vshrl.u32 %v3298, 7
    %v3300 = vsub.s32 %v3297, %v3299
    %v3301 = vrot.slane %v3273, %v3300
    %v3302 = vcombine.high %v3280, %v3280
    %v3303 = vcombine.high %v3287, %v3287
    %v3304 = vcombine.high %v3294, %v3294
    %v3305 = vcombine.high %v3301, %v3301
    %v3306 = vcombine.high %v3194, %v3194
    %v3308 = vunpack.c.l.s4 1966171168
    %v3309 = vunpack.c.0.s8 %v3308
    %v3310 = vlaneseq
    %v3311 = vshrl.u32 %v3310, 7
    %v3312 = vsub.s32 %v3309, %v3311
    %v3313 = vrot.slane %v3194, %v3312
    %v3315 = vunpack.c.l.s4 1966171168
    %v3316 = vunpack.c.0.s8 %v3315
    %v3317 = vlaneseq
    %v3318 = vshrl.u32 %v3317, 7
    %v3319 = vsub.s32 %v3316, %v3318
    %v3320 = vrot.slane %v3306, %v3319
    %v3321 = vcombine.high %v3313, %v3313
    %v3322 = vcombine.high %v3320, %v3320
    %v3324 = vunpack.c.l.s4 1966171168
    %v3325 = vunpack.c.0.s8 %v3324
    %v3326 = vlaneseq
    %v3327 = vshrl.u32 %v3326, 7
    %v3328 = vsub.s32 %v3325, %v3327
    %v3329 = vrot.slane %v3313, %v3328
    %v3331 = vunpack.c.l.s4 1966171168
    %v3332 = vunpack.c.0.s8 %v3331
    %v3333 = vlaneseq
    %v3334 = vshrl.u32 %v3333, 7
    %v3335 = vsub.s32 %v3332, %v3334
    %v3336 = vrot.slane %v3320, %v3335
    %v3338 = vunpack.c.l.s4 1966171168
    %v3339 = vunpack.c.0.s8 %v3338
    %v3340 = vlaneseq
    %v3341 = vshrl.u32 %v3340, 7
    %v3342 = vsub.s32 %v3339, %v3341
    %v3343 = vrot.slane %v3321, %v3342
    %v3345 = vunpack.c.l.s4 1966171168
    %v3346 = vunpack.c.0.s8 %v3345
    %v3347 = vlaneseq
    %v3348 = vshrl.u32 %v3347, 7
    %v3349 = vsub.s32 %v3346, %v3348
    %v3350 = vrot.slane %v3322, %v3349
    %v3351 = vcombine.high %v3329, %v3329
    %v3352 = vcombine.high %v3336, %v3336
    %v3353 = vcombine.high %v3343, %v3343
    %v3354 = vcombine.high %v3350, %v3350
    %v3355 = vcombine.high %v3195, %v3195
    %v3357 = vunpack.c.l.s4 1966171168
    %v3358 = vunpack.c.0.s8 %v3357
    %v3359 = vlaneseq
    %v3360 = vshrl.u32 %v3359, 7
    %v3361 = vsub.s32 %v3358, %v3360
    %v3362 = vrot.slane %v3195, %v3361
    %v3364 = vunpack.c.l.s4 1966171168
    %v3365 = vunpack.c.0.s8 %v3364
    %v3366 = vlaneseq
    %v3367 = vshrl.u32 %v3366, 7
    %v3368 = vsub.s32 %v3365, %v3367
    %v3369 = vrot.slane %v3355, %v3368
    %v3370 = vcombine.high %v3362, %v3362
    %v3371 = vcombine.high %v3369, %v3369
    %v3373 = vunpack.c.l.s4 1966171168
    %v3374 = vunpack.c.0.s8 %v3373
    %v3375 = vlaneseq
    %v3376 = vshrl.u32 %v3375, 7
    %v3377 = vsub.s32 %v3374, %v3376
    %v3378 = vrot.slane %v3362, %v3377
    %v3380 = vunpack.c.l.s4 1966171168
    %v3381 = vunpack.c.0.s8 %v3380
    %v3382 = vlaneseq
    %v3383 = vshrl.u32 %v3382, 7
    %v3384 = vsub.s32 %v3381, %v3383
    %v3385 = vrot.slane %v3369, %v3384
    %v3387 = vunpack.c.l.s4 1966171168
    %v3388 = vunpack.c.0.s8 %v3387
    %v3389 = vlaneseq
    %v3390 = vshrl.u32 %v3389, 7
    %v3391 = vsub.s32 %v3388, %v3390
    %v3392 = vrot.slane %v3370, %v3391
    %v3394 = vunpack.c.l.s4 1966171168
    %v3395 = vunpack.c.0.s8 %v3394
    %v3396 = vlaneseq
    %v3397 = vshrl.u32 %v3396, 7
    %v3398 = vsub.s32 %v3395, %v3397
    %v3399 = vrot.slane %v3371, %v3398
    %v3400 = vcombine.high %v3378, %v3378
    %v3401 = vcombine.high %v3385, %v3385
    %v3402 = vcombine.high %v3392, %v3392
    %v3403 = vcombine.high %v3399, %v3399
    %v3404 = vcombine.high %v3196, %v3196
    %v3406 = vunpack.c.l.s4 1966171168
    %v3407 = vunpack.c.0.s8 %v3406
    %v3408 = vlaneseq
    %v3409 = vshrl.u32 %v3408, 7
    %v3410 = vsub.s32 %v3407, %v3409
    %v3411 = vrot.slane %v3196, %v3410
    %v3413 = vunpack.c.l.s4 1966171168
    %v3414 = vunpack.c.0.s8 %v3413
    %v3415 = vlaneseq
    %v3416 = vshrl.u32 %v3415, 7
    %v3417 = vsub.s32 %v3414, %v3416
    %v3418 = vrot.slane %v3404, %v3417
    %v3419 = vcombine.high %v3411, %v3411
    %v3420 = vcombine.high %v3418, %v3418
    %v3422 = vunpack.c.l.s4 1966171168
    %v3423 = vunpack.c.0.s8 %v3422
    %v3424 = vlaneseq
    %v3425 = vshrl.u32 %v3424, 7
    %v3426 = vsub.s32 %v3423, %v3425
    %v3427 = vrot.slane %v3411, %v3426
    %v3429 = vunpack.c.l.s4 1966171168
    %v3430 = vunpack.c.0.s8 %v3429
    %v3431 = vlaneseq
    %v3432 = vshrl.u32 %v3431, 7
    %v3433 = vsub.s32 %v3430, %v3432
    %v3434 = vrot.slane %v3418, %v3433
    %v3436 = vunpack.c.l.s4 1966171168
    %v3437 = vunpack.c.0.s8 %v3436
    %v3438 = vlaneseq
    %v3439 = vshrl.u32 %v3438, 7
    %v3440 = vsub.s32 %v3437, %v3439
    %v3441 = vrot.slane %v3419, %v3440
    %v3443 = vunpack.c.l.s4 1966171168
    %v3444 = vunpack.c.0.s8 %v3443
    %v3445 = vlaneseq
    %v3446 = vshrl.u32 %v3445, 7
    %v3447 = vsub.s32 %v3444, %v3446
    %v3448 = vrot.slane %v3420, %v3447
    %v3449 = vcombine.high %v3427, %v3427
    %v3450 = vcombine.high %v3434, %v3434
    %v3451 = vcombine.high %v3441, %v3441
    %v3452 = vcombine.high %v3448, %v3448
    %v3453 = vcombine.high %v3197, %v3197
    %v3455 = vunpack.c.l.s4 1966171168
    %v3456 = vunpack.c.0.s8 %v3455
    %v3457 = vlaneseq
    %v3458 = vshrl.u32 %v3457, 7
    %v3459 = vsub.s32 %v3456, %v3458
    %v3460 = vrot.slane %v3197, %v3459
    %v3462 = vunpack.c.l.s4 1966171168
    %v3463 = vunpack.c.0.s8 %v3462
    %v3464 = vlaneseq
    %v3465 = vshrl.u32 %v3464, 7
    %v3466 = vsub.s32 %v3463, %v3465
    %v3467 = vrot.slane %v3453, %v3466
    %v3468 = vcombine.high %v3460, %v3460
    %v3469 = vcombine.high %v3467, %v3467
    %v3471 = vunpack.c.l.s4 1966171168
    %v3472 = vunpack.c.0.s8 %v3471
    %v3473 = vlaneseq
    %v3474 = vshrl.u32 %v3473, 7
    %v3475 = vsub.s32 %v3472, %v3474
    %v3476 = vrot.slane %v3460, %v3475
    %v3478 = vunpack.c.l.s4 1966171168
    %v3479 = vunpack.c.0.s8 %v3478
    %v3480 = vlaneseq
    %v3481 = vshrl.u32 %v3480, 7
    %v3482 = vsub.s32 %v3479, %v3481
    %v3483 = vrot.slane %v3467, %v3482
    %v3485 = vunpack.c.l.s4 1966171168
    %v3486 = vunpack.c.0.s8 %v3485
    %v3487 = vlaneseq
    %v3488 = vshrl.u32 %v3487, 7
    %v3489 = vsub.s32 %v3486, %v3488
    %v3490 = vrot.slane %v3468, %v3489
    %v3492 = vunpack.c.l.s4 1966171168
    %v3493 = vunpack.c.0.s8 %v3492
    %v3494 = vlaneseq
    %v3495 = vshrl.u32 %v3494, 7
    %v3496 = vsub.s32 %v3493, %v3495
    %v3497 = vrot.slane %v3469, %v3496
    %v3498 = vcombine.high %v3476, %v3476
    %v3499 = vcombine.high %v3483, %v3483
    %v3500 = vcombine.high %v3490, %v3490
    %v3501 = vcombine.high %v3497, %v3497
    %v3502 = vcombine.high %v3198, %v3198
    %v3504 = vunpack.c.l.s4 1966171168
    %v3505 = vunpack.c.0.s8 %v3504
    %v3506 = vlaneseq
    %v3507 = vshrl.u32 %v3506, 7
    %v3508 = vsub.s32 %v3505, %v3507
    %v3509 = vrot.slane %v3198, %v3508
    %v3511 = vunpack.c.l.s4 1966171168
    %v3512 = vunpack.c.0.s8 %v3511
    %v3513 = vlaneseq
    %v3514 = vshrl.u32 %v3513, 7
    %v3515 = vsub.s32 %v3512, %v3514
    %v3516 = vrot.slane %v3502, %v3515
    %v3517 = vcombine.high %v3509, %v3509
    %v3518 = vcombine.high %v3516, %v3516
    %v3520 = vunpack.c.l.s4 1966171168
    %v3521 = vunpack.c.0.s8 %v3520
    %v3522 = vlaneseq
    %v3523 = vshrl.u32 %v3522, 7
    %v3524 = vsub.s32 %v3521, %v3523
    %v3525 = vrot.slane %v3509, %v3524
    %v3527 = vunpack.c.l.s4 1966171168
    %v3528 = vunpack.c.0.s8 %v3527
    %v3529 = vlaneseq
    %v3530 = vshrl.u32 %v3529, 7
    %v3531 = vsub.s32 %v3528, %v3530
    %v3532 = vrot.slane %v3516, %v3531
    %v3534 = vunpack.c.l.s4 1966171168
    %v3535 = vunpack.c.0.s8 %v3534
    %v3536 = vlaneseq
    %v3537 = vshrl.u32 %v3536, 7
    %v3538 = vsub.s32 %v3535, %v3537
    %v3539 = vrot.slane %v3517, %v3538
    %v3541 = vunpack.c.l.s4 1966171168
    %v3542 = vunpack.c.0.s8 %v3541
    %v3543 = vlaneseq
    %v3544 = vshrl.u32 %v3543, 7
    %v3545 = vsub.s32 %v3542, %v3544
    %v3546 = vrot.slane %v3518, %v3545
    %v3547 = vcombine.high %v3525, %v3525
    %v3548 = vcombine.high %v3532, %v3532
    %v3549 = vcombine.high %v3539, %v3539
    %v3550 = vcombine.high %v3546, %v3546
    %v3551 = vcombine.high %v3199, %v3199
    %v3553 = vunpack.c.l.s4 1966171168
    %v3554 = vunpack.c.0.s8 %v3553
    %v3555 = vlaneseq
    %v3556 = vshrl.u32 %v3555, 7
    %v3557 = vsub.s32 %v3554, %v3556
    %v3558 = vrot.slane %v3199, %v3557
    %v3560 = vunpack.c.l.s4 1966171168
    %v3561 = vunpack.c.0.s8 %v3560
    %v3562 = vlaneseq
    %v3563 = vshrl.u32 %v3562, 7
    %v3564 = vsub.s32 %v3561, %v3563
    %v3565 = vrot.slane %v3551, %v3564
    %v3566 = vcombine.high %v3558, %v3558
    %v3567 = vcombine.high %v3565, %v3565
    %v3569 = vunpack.c.l.s4 1966171168
    %v3570 = vunpack.c.0.s8 %v3569
    %v3571 = vlaneseq
    %v3572 = vshrl.u32 %v3571, 7
    %v3573 = vsub.s32 %v3570, %v3572
    %v3574 = vrot.slane %v3558, %v3573
    %v3576 = vunpack.c.l.s4 1966171168
    %v3577 = vunpack.c.0.s8 %v3576
    %v3578 = vlaneseq
    %v3579 = vshrl.u32 %v3578, 7
    %v3580 = vsub.s32 %v3577, %v3579
    %v3581 = vrot.slane %v3565, %v3580
    %v3583 = vunpack.c.l.s4 1966171168
    %v3584 = vunpack.c.0.s8 %v3583
    %v3585 = vlaneseq
    %v3586 = vshrl.u32 %v3585, 7
    %v3587 = vsub.s32 %v3584, %v3586
    %v3588 = vrot.slane %v3566, %v3587
    %v3590 = vunpack.c.l.s4 1966171168
    %v3591 = vunpack.c.0.s8 %v3590
    %v3592 = vlaneseq
    %v3593 = vshrl.u32 %v3592, 7
    %v3594 = vsub.s32 %v3591, %v3593
    %v3595 = vrot.slane %v3567, %v3594
    %v3596 = vcombine.high %v3574, %v3574
    %v3597 = vcombine.high %v3581, %v3581
    %v3598 = vcombine.high %v3588, %v3588
    %v3599 = vcombine.high %v3595, %v3595
    %3664 = vst [vmem:[#allocation10] sm:$0x1] %v3231
    %3665 = vst [vmem:[#allocation10 + $0x1] sm:$0x1] %v3245
    %3666 = vst [vmem:[#allocation10 + $0x2] sm:$0x1] %v3253
    %3667 = vst [vmem:[#allocation10 + $0x3] sm:$0x1] %v3255
    %3668 = vst [vmem:[#allocation10 + $0x4] sm:$0x1] %v3238
    %3669 = vst [vmem:[#allocation10 + $0x5] sm:$0x1] %v3252
    %3670 = vst [vmem:[#allocation10 + $0x6] sm:$0x1] %v3254
    %3671 = vst [vmem:[#allocation10 + $0x7] sm:$0x1] %v3256
    %3672 = vst [vmem:[#allocation10 + $0x8] sm:$0x1] %v3280
    %3673 = vst [vmem:[#allocation10 + $0x9] sm:$0x1] %v3294
    %3674 = vst [vmem:[#allocation10 + $0xa] sm:$0x1] %v3302
    %3675 = vst [vmem:[#allocation10 + $0xb] sm:$0x1] %v3304
    %3676 = vst [vmem:[#allocation10 + $0xc] sm:$0x1] %v3287
    %3677 = vst [vmem:[#allocation10 + $0xd] sm:$0x1] %v3301
    %3678 = vst [vmem:[#allocation10 + $0xe] sm:$0x1] %v3303
    %3679 = vst [vmem:[#allocation10 + $0xf] sm:$0x1] %v3305
    %3680 = vst [vmem:[#allocation10 + $0x10] sm:$0x1] %v3329
    %3681 = vst [vmem:[#allocation10 + $0x11] sm:$0x1] %v3343
    %3682 = vst [vmem:[#allocation10 + $0x12] sm:$0x1] %v3351
    %3683 = vst [vmem:[#allocation10 + $0x13] sm:$0x1] %v3353
    %3684 = vst [vmem:[#allocation10 + $0x14] sm:$0x1] %v3336
    %3685 = vst [vmem:[#allocation10 + $0x15] sm:$0x1] %v3350
    %3686 = vst [vmem:[#allocation10 + $0x16] sm:$0x1] %v3352
    %3687 = vst [vmem:[#allocation10 + $0x17] sm:$0x1] %v3354
    %3688 = vst [vmem:[#allocation10 + $0x18] sm:$0x1] %v3378
    %3689 = vst [vmem:[#allocation10 + $0x19] sm:$0x1] %v3392
    %3690 = vst [vmem:[#allocation10 + $0x1a] sm:$0x1] %v3400
    %3691 = vst [vmem:[#allocation10 + $0x1b] sm:$0x1] %v3402
    %3692 = vst [vmem:[#allocation10 + $0x1c] sm:$0x1] %v3385
    %3693 = vst [vmem:[#allocation10 + $0x1d] sm:$0x1] %v3399
    %3694 = vst [vmem:[#allocation10 + $0x1e] sm:$0x1] %v3401
    %3695 = vst [vmem:[#allocation10 + $0x1f] sm:$0x1] %v3403
    %3696 = vst [vmem:[#allocation10 + $0x20] sm:$0x1] %v3427
    %3697 = vst [vmem:[#allocation10 + $0x21] sm:$0x1] %v3441
    %3698 = vst [vmem:[#allocation10 + $0x22] sm:$0x1] %v3449
    %3699 = vst [vmem:[#allocation10 + $0x23] sm:$0x1] %v3451
    %3700 = vst [vmem:[#allocation10 + $0x24] sm:$0x1] %v3434
    %3701 = vst [vmem:[#allocation10 + $0x25] sm:$0x1] %v3448
    %3702 = vst [vmem:[#allocation10 + $0x26] sm:$0x1] %v3450
    %3703 = vst [vmem:[#allocation10 + $0x27] sm:$0x1] %v3452
    %3704 = vst [vmem:[#allocation10 + $0x28] sm:$0x1] %v3476
    %3705 = vst [vmem:[#allocation10 + $0x29] sm:$0x1] %v3490
    %3706 = vst [vmem:[#allocation10 + $0x2a] sm:$0x1] %v3498
    %3707 = vst [vmem:[#allocation10 + $0x2b] sm:$0x1] %v3500
    %3708 = vst [vmem:[#allocation10 + $0x2c] sm:$0x1] %v3483
    %3709 = vst [vmem:[#allocation10 + $0x2d] sm:$0x1] %v3497
    %3710 = vst [vmem:[#allocation10 + $0x2e] sm:$0x1] %v3499
    %3711 = vst [vmem:[#allocation10 + $0x2f] sm:$0x1] %v3501
    %3712 = vst [vmem:[#allocation10 + $0x30] sm:$0x1] %v3525
    %3713 = vst [vmem:[#allocation10 + $0x31] sm:$0x1] %v3539
    %3714 = vst [vmem:[#allocation10 + $0x32] sm:$0x1] %v3547
    %3715 = vst [vmem:[#allocation10 + $0x33] sm:$0x1] %v3549
    %3716 = vst [vmem:[#allocation10 + $0x34] sm:$0x1] %v3532
    %3717 = vst [vmem:[#allocation10 + $0x35] sm:$0x1] %v3546
    %3718 = vst [vmem:[#allocation10 + $0x36] sm:$0x1] %v3548
    %3719 = vst [vmem:[#allocation10 + $0x37] sm:$0x1] %v3550
    %3720 = vst [vmem:[#allocation10 + $0x38] sm:$0x1] %v3574
    %3721 = vst [vmem:[#allocation10 + $0x39] sm:$0x1] %v3588
    %3722 = vst [vmem:[#allocation10 + $0x3a] sm:$0x1] %v3596
    %3723 = vst [vmem:[#allocation10 + $0x3b] sm:$0x1] %v3598
    %3724 = vst [vmem:[#allocation10 + $0x3c] sm:$0x1] %v3581
    %3725 = vst [vmem:[#allocation10 + $0x3d] sm:$0x1] %v3595
    %3726 = vst [vmem:[#allocation10 + $0x3e] sm:$0x1] %v3597
    %3727 = vst [vmem:[#allocation10 + $0x3f] sm:$0x1] %v3599
    // Predicated region
    $region46: #{tpu_custom_call.1} parent=1 // pred_check
      _
    $region47: #{tpu_custom_call.1} parent=1 // pred_check_branch
      %3729 = sbr.rel (0) target = $region49
    $region48: #{tpu_custom_call.1} parent=1 // pred_region
      %s3731 = ssub.s32 1024, 16
      %3732 = vsyncadd [#allocation4], %s3731
      %s3733 = sshll.u32 [#allocation10], 4
      %s3734 = int_to_ptr.vmem [resolvable:$true] %s3733
      %3739 = dma.vmem_to_hbm [thread:$0]  %s3734, 16, %s7, [#allocation4], 16, 16, 1
    $region49: #{tpu_custom_call.1} parent=1 // pred_fallthru
      _
    // Predicated region
    $region50: #{tpu_custom_call.1} parent=1 // pred_check
      _
    $region51: #{tpu_custom_call.1} parent=1 // pred_check_branch
      %3741 = sbr.rel (0) target = $region53
    $region52: #{tpu_custom_call.1} parent=1 // pred_region
      %3742 = dma.done [#allocation4], 1024
    $region53: #{tpu_custom_call.1} parent=1 // pred_fallthru
      _
    %3743 = vsyncpa [#allocation3], 1
    %3744 = vsyncpa [#allocation6], 1
    %3745 = vsyncpa [#allocation9], 1
    %3746 = vsyncpa [#allocation4], 1

</llo_original>
